<compile_context>
chip_gen: v7x
topology: tpu7x:2x2x1
jax: 0.10.0
libtpu: 0.0.40
codegen_flags: <defaults>
</compile_context>

<pallas_src>
import jax
import jax.numpy as jnp
from jax.experimental import pallas as pl
from jax.experimental.pallas import tpu as pltpu


def decoder_kernel(z_ref, w1_ref, b1_ref, w2_ref, b2_ref, out_ref):
    # hidden = relu(z @ W1 + b1)   -- bf16 MXU inputs, fp32 accumulation.
    h = jnp.dot(z_ref[...], w1_ref[...], preferred_element_type=jnp.float32)
    h = jnp.maximum(h + b1_ref[...], 0.0)                 # fp32 elementwise
    # out = sigmoid(h @ W2 + b2)
    o = jnp.dot(h.astype(jnp.bfloat16), w2_ref[...],
                preferred_element_type=jnp.float32)
    out_ref[...] = jax.nn.sigmoid(o + b2_ref[...]).astype(out_ref.dtype)


def prepare_params(w1, b1, w2, b2):
    """One-time conversion: bf16 weights (MXU inputs), fp32 row-vector biases
    (added post-accumulation). No output-dim padding -- the kernel writes the
    true 784-wide output."""
    w1_b = w1.astype(jnp.bfloat16)
    w2_b = w2.astype(jnp.bfloat16)
    b1_r = b1.reshape(1, -1).astype(jnp.float32)
    b2_r = b2.reshape(1, -1).astype(jnp.float32)
    return w1_b, b1_r, w2_b, b2_r


def _round_up(x, m):
    return ((x + m - 1) // m) * m


def _choose_batch_tile(B, block_b, granule=256):
    """Balanced batch tiles.

    - Small B: one tile rounded up to 8 sublanes (minimal padded rows).
    - Larger B: >= 2 grid steps (so v7x megacore gets work on both TCs),
      tiles balanced so an unlucky B doesn't pad nearly a whole extra tile.
      Prefer multiples of `granule` (MXU-friendly); if that rounding would
      still waste more than half a tile of dead rows, fall back to sublane
      (8-row) granularity -- the MXU streams the M dim in 8-row steps, so the
      efficiency cost is far smaller than computing/writing dead rows.
    """
    if B <= max(granule, 256):
        return max(8, _round_up(B, 8))
    n_tiles = max(2, pl.cdiv(B, block_b))
    bt = _round_up(pl.cdiv(B, n_tiles), granule)
    if n_tiles * bt - B > bt // 2:
        bt = _round_up(pl.cdiv(B, n_tiles), 8)
    return min(bt, _round_up(block_b, 8))


def decoder_forward(z, w1_b, b1_r, w2_b, b2_r, *, block_b=1024,
                    out_dtype=jnp.bfloat16):
    """z: (B, latent) fp32 -> (B*784/2352, 3, 28, 28), matching the torch
    module's forward (output dtype bf16 by default; pass jnp.float32 for a
    bit-closer match to the fp32 module)."""
    B, latent = z.shape
    hidden = w1_b.shape[1]
    out_dim = w2_b.shape[1]

    bt = _choose_batch_tile(B, block_b)
    b_pad = pl.cdiv(B, bt) * bt

    z_p = z.astype(jnp.bfloat16)
    if b_pad != B:
        z_p = jnp.pad(z_p, ((0, b_pad - B), (0, 0)))

    flat = pl.pallas_call(
        decoder_kernel,
        out_shape=jax.ShapeDtypeStruct((b_pad, out_dim), out_dtype),
        grid_spec=pltpu.PrefetchScalarGridSpec(
            num_scalar_prefetch=0,
            grid=(b_pad // bt,),
            in_specs=[
                pl.BlockSpec((bt, latent), lambda i: (i, 0)),        # z streams
                pl.BlockSpec((latent, hidden), lambda i: (0, 0)),    # W1 resident
                pl.BlockSpec((1, hidden), lambda i: (0, 0)),         # b1 resident
                pl.BlockSpec((hidden, out_dim), lambda i: (0, 0)),   # W2 resident
                pl.BlockSpec((1, out_dim), lambda i: (0, 0)),        # b2 resident
            ],
            out_specs=pl.BlockSpec((bt, out_dim), lambda i: (i, 0)),
        ),
        compiler_params=pltpu.CompilerParams(
            dimension_semantics=("parallel",),   # megacore sharding on v7x
        ),
    )(z_p, w1_b, b1_r, w2_b, b2_r)

    # Drop batch padding only if any was added (no output-column slice pass).
    if b_pad != B:
        flat = flat[:B]
    return flat.reshape((-1, 3, 28, 28))


def init_params(key, latent_dims, hidden_dim=512, output_dim=784):
    """Deterministic PyTorch-style (uniform +-1/sqrt(fan_in)) initialization."""
    k1, k2, k3, k4 = jax.random.split(key, 4)
    lim1 = 1.0 / jnp.sqrt(latent_dims)
    lim2 = 1.0 / jnp.sqrt(hidden_dim)
    w1 = jax.random.uniform(k1, (latent_dims, hidden_dim), jnp.float32, -lim1, lim1)
    b1 = jax.random.uniform(k2, (hidden_dim,), jnp.float32, -lim1, lim1)
    w2 = jax.random.uniform(k3, (hidden_dim, output_dim), jnp.float32, -lim2, lim2)
    b2 = jax.random.uniform(k4, (output_dim,), jnp.float32, -lim2, lim2)
    return w1, b1, w2, b2


if __name__ == "__main__":
    latent_dims = 8
    hidden_dim = 512
    output_dim = 784
    batch = 6  # must be divisible by 3 for the (-1, 3, 28, 28) reshape

    key = jax.random.PRNGKey(0)
    kz, kp = jax.random.split(key)
    z = jax.random.normal(kz, (batch, latent_dims), jnp.float32)
    w1, b1, w2, b2 = init_params(kp, latent_dims, hidden_dim, output_dim)

    w1_b, b1_r, w2_b, b2_r = prepare_params(w1, b1, w2, b2)
    out = decoder_forward(z, w1_b, b1_r, w2_b, b2_r)
    out = jax.block_until_ready(out)

    # sanity: shape check
    assert out.shape == (batch // 3, 3, 28, 28), out.shape

    out_f32 = out.astype(jnp.float32)

    # reference with matching bf16 matmul inputs / fp32 accumulation
    h_ref = jnp.maximum(
        jnp.dot(z.astype(jnp.bfloat16), w1.astype(jnp.bfloat16),
                preferred_element_type=jnp.float32) + b1, 0.0)
    ref_bf16 = jax.nn.sigmoid(
        jnp.dot(h_ref.astype(jnp.bfloat16), w2.astype(jnp.bfloat16),
                preferred_element_type=jnp.float32) + b2
    ).reshape(-1, 3, 28, 28)
    assert jnp.allclose(out_f32, ref_bf16, atol=2e-2, rtol=2e-2)

    # loose check against the pure-fp32 torch-equivalent forward
    ref_f32 = jax.nn.sigmoid(
        jnp.maximum(z @ w1 + b1, 0.0) @ w2 + b2).reshape(-1, 3, 28, 28)
    assert jnp.allclose(out_f32, ref_f32, atol=5e-2, rtol=5e-2)

    print("KERNEL_OK")
</pallas_src>

<mosaic_0001>
module attributes {stable_mosaic.version = 11 : i64} {
  func.func @decoder_kernel(%arg0: i32, %arg1: memref<8x8xbf16, #tpu.memory_space<vmem>>, %arg2: memref<8x512xbf16, #tpu.memory_space<vmem>>, %arg3: memref<1x512xf32, #tpu.memory_space<vmem>>, %arg4: memref<512x784xbf16, #tpu.memory_space<vmem>>, %arg5: memref<1x784xf32, #tpu.memory_space<vmem>>, %arg6: memref<8x784xbf16, #tpu.memory_space<vmem>>) attributes {dimension_semantics = [#tpu.dimension_semantics<parallel>], iteration_bounds = array<i64: 1>, scalar_prefetch = 0 : i64, scratch_operands = 0 : i64, tpu.core_type = #tpu.core_type<tc>, window_params = [{transform_indices = @transform_0, window_bounds = array<i64: 8, 8>}, {pipeline_mode = #tpu.pipeline_mode<synchronous>, transform_indices = @transform_1, window_bounds = array<i64: 8, 512>}, {pipeline_mode = #tpu.pipeline_mode<synchronous>, transform_indices = @transform_2, window_bounds = array<i64: 1, 512>}, {pipeline_mode = #tpu.pipeline_mode<synchronous>, transform_indices = @transform_3, window_bounds = array<i64: 512, 784>}, {pipeline_mode = #tpu.pipeline_mode<synchronous>, transform_indices = @transform_4, window_bounds = array<i64: 1, 784>}, {transform_indices = @transform_5, window_bounds = array<i64: 8, 784>}]} {
    %c0 = arith.constant 0 : index
    %c0_0 = arith.constant 0 : index
    %0 = vector.load %arg1[%c0, %c0_0] : memref<8x8xbf16, #tpu.memory_space<vmem>>, vector<8x8xbf16>
    %c0_1 = arith.constant 0 : index
    %c0_2 = arith.constant 0 : index
    %1 = vector.load %arg2[%c0_1, %c0_2] : memref<8x512xbf16, #tpu.memory_space<vmem>>, vector<8x512xbf16>
    %cst = arith.constant dense<0.000000e+00> : vector<8x512xf32>
    %2 = tpu.matmul %0, %1, %cst {dimension_numbers = #tpu.dot_dimension_numbers<[1], [0], [0], [1], [0, 0, 1, 1], [], []>} : vector<8x8xbf16>, vector<8x512xbf16>, vector<8x512xf32> -> vector<8x512xf32>
    %c0_3 = arith.constant 0 : index
    %c0_4 = arith.constant 0 : index
    %3 = vector.load %arg3[%c0_3, %c0_4] : memref<1x512xf32, #tpu.memory_space<vmem>>, vector<1x512xf32>
    %4 = vector.broadcast %3 : vector<1x512xf32> to vector<8x512xf32>
    %5 = arith.addf %2, %4 : vector<8x512xf32>
    %cst_5 = arith.constant 0.000000e+00 : f32
    %6 = vector.broadcast %cst_5 : f32 to vector<8x512xf32>
    %7 = arith.maximumf %5, %6 : vector<8x512xf32>
    %8 = arith.truncf %7 : vector<8x512xf32> to vector<8x512xbf16>
    %c0_6 = arith.constant 0 : index
    %c0_7 = arith.constant 0 : index
    %9 = vector.load %arg4[%c0_6, %c0_7] : memref<512x784xbf16, #tpu.memory_space<vmem>>, vector<512x784xbf16>
    %cst_8 = arith.constant dense<0.000000e+00> : vector<8x784xf32>
    %10 = tpu.matmul %8, %9, %cst_8 {dimension_numbers = #tpu.dot_dimension_numbers<[1], [0], [0], [1], [0, 0, 1, 1], [], []>} : vector<8x512xbf16>, vector<512x784xbf16>, vector<8x784xf32> -> vector<8x784xf32>
    %c0_9 = arith.constant 0 : index
    %c0_10 = arith.constant 0 : index
    %11 = vector.load %arg5[%c0_9, %c0_10] : memref<1x784xf32, #tpu.memory_space<vmem>>, vector<1x784xf32>
    %12 = vector.broadcast %11 : vector<1x784xf32> to vector<8x784xf32>
    %13 = arith.addf %10, %12 : vector<8x784xf32>
    %14 = arith.negf %13 : vector<8x784xf32>
    %15 = math.exp %14 : vector<8x784xf32>
    %cst_11 = arith.constant 1.000000e+00 : f32
    %16 = vector.broadcast %cst_11 : f32 to vector<8x784xf32>
    %17 = arith.addf %16, %15 : vector<8x784xf32>
    %18 = arith.divf %16, %17 : vector<8x784xf32>
    %19 = arith.truncf %18 : vector<8x784xf32> to vector<8x784xbf16>
    %c0_12 = arith.constant 0 : index
    %c0_13 = arith.constant 0 : index
    %20 = vector.load %arg6[%c0_12, %c0_13] : memref<8x784xbf16, #tpu.memory_space<vmem>>, vector<8x784xbf16>
    tpu.vector_store %arg6[%c0_12, %c0_13], %19 {strides = array<i32>} : memref<8x784xbf16, #tpu.memory_space<vmem>>, vector<8x784xbf16>,
    return
  }
  func.func @transform_0(%arg0: i32) -> (i32, i32) {
    %c0_i32 = arith.constant 0 : i32
    %c0_i32_0 = arith.constant 0 : i32
    return %arg0, %c0_i32 : i32, i32
  }
  func.func @transform_1(%arg0: i32) -> (i32, i32) {
    %c0_i32 = arith.constant 0 : i32
    %c0_i32_0 = arith.constant 0 : i32
    %c0_i32_1 = arith.constant 0 : i32
    return %c0_i32, %c0_i32_0 : i32, i32
  }
  func.func @transform_2(%arg0: i32) -> (i32, i32) {
    %c0_i32 = arith.constant 0 : i32
    %c0_i32_0 = arith.constant 0 : i32
    %c0_i32_1 = arith.constant 0 : i32
    return %c0_i32, %c0_i32_0 : i32, i32
  }
  func.func @transform_3(%arg0: i32) -> (i32, i32) {
    %c0_i32 = arith.constant 0 : i32
    %c0_i32_0 = arith.constant 0 : i32
    %c0_i32_1 = arith.constant 0 : i32
    return %c0_i32, %c0_i32_0 : i32, i32
  }
  func.func @transform_4(%arg0: i32) -> (i32, i32) {
    %c0_i32 = arith.constant 0 : i32
    %c0_i32_0 = arith.constant 0 : i32
    %c0_i32_1 = arith.constant 0 : i32
    return %c0_i32, %c0_i32_0 : i32, i32
  }
  func.func @transform_5(%arg0: i32) -> (i32, i32) {
    %c0_i32 = arith.constant 0 : i32
    %c0_i32_0 = arith.constant 0 : i32
    return %arg0, %c0_i32 : i32, i32
  }
}

</mosaic_0001>

<llo_original>
// kernel: tpu_custom_call.1
$region0: #{tpu_custom_call.1}
  #allocation0 [shape = 'u32[]', space=smem, size = 0x4, offset = 0x4, fixed_abs, tag = 'smem constant byte address 0x4 - core index']
  #allocation1 [shape = 'u32[144,128]{1,0:T(1,128)}', space=vmem, size = 0x12000, scoped, tag = 'internal scratch']
  %s0 = inlined_call_operand.vmem [shape: bf16[8,8], index: 0, kind: input, shape index: {}]
  %s1 = inlined_call_operand.vmem [shape: bf16[8,512], index: 1, kind: input, shape index: {}]
  %s2 = inlined_call_operand.vmem [shape: f32[1,512], index: 2, kind: input, shape index: {}]
  %s3 = inlined_call_operand.vmem [shape: bf16[512,784], index: 3, kind: input, shape index: {}]
  %s4 = inlined_call_operand.vmem [shape: f32[1,784], index: 4, kind: input, shape index: {}]
  %s5 = inlined_call_operand.hbm [shape: bf16[8,784], index: 5, kind: output, shape index: {}]
  %s6 = sld [smem:[#allocation0]]
  $region30: #{tpu_custom_call.1} parent=0
    _
  %s8 = ssub.s32 1, %s6
  %s9 = scalar_select 0, %s8, %s6
  $region1: #{tpu_custom_call.1} parent=0
    #allocation2 [shape = 'u8[14336]{0}', space=vmem, size = 0x3800, scoped, tag = 'output window, operand 0, single buffered']
    #allocation3 [shape = 's32[1]{0}', space=sflag, size = 0x4, scoped, tag = 'scoped memory for tpu_custom_call.1']
    %10 = vsyncpa [#allocation3], 0
    // Predicated region
    $region2: #{tpu_custom_call.1} parent=1 // pred_check
      _
    $region3: #{tpu_custom_call.1} parent=1 // pred_check_branch
      %12 = sbr.rel (0) target = $region5
    $region4: #{tpu_custom_call.1} parent=1 // pred_region
      _
    $region5: #{tpu_custom_call.1} parent=1 // pred_fallthru
      _
    // Predicated region
    $region6: #{tpu_custom_call.1} parent=1 // pred_check
      _
    $region7: #{tpu_custom_call.1} parent=1 // pred_check_branch
      %14 = sbr.rel (0) target = $region9
    $region8: #{tpu_custom_call.1} parent=1 // pred_region
      _
    $region9: #{tpu_custom_call.1} parent=1 // pred_fallthru
      _
    // Predicated region
    $region10: #{tpu_custom_call.1} parent=1 // pred_check
      _
    $region11: #{tpu_custom_call.1} parent=1 // pred_check_branch
      %16 = sbr.rel (0) target = $region13
    $region12: #{tpu_custom_call.1} parent=1 // pred_region
      _
    $region13: #{tpu_custom_call.1} parent=1 // pred_fallthru
      _
    // Predicated region
    $region14: #{tpu_custom_call.1} parent=1 // pred_check
      _
    $region15: #{tpu_custom_call.1} parent=1 // pred_check_branch
      %18 = sbr.rel (0) target = $region17
    $region16: #{tpu_custom_call.1} parent=1 // pred_region
      _
    $region17: #{tpu_custom_call.1} parent=1 // pred_fallthru
      _
    // Predicated region
    $region18: #{tpu_custom_call.1} parent=1 // pred_check
      _
    $region19: #{tpu_custom_call.1} parent=1 // pred_check_branch
      %20 = sbr.rel (0) target = $region21
    $region20: #{tpu_custom_call.1} parent=1 // pred_region
      _
    $region21: #{tpu_custom_call.1} parent=1 // pred_fallthru
      _
    %v22 = vld [vmem:[%s0] sm:$0xf]
    %v23 = vld [vmem:[%s1] sm:$0xff]
    %v24 = vld [vmem:[%s1 + $0x8] sm:$0xff]
    %v25 = vld [vmem:[%s2] sm:$0xf]
    %v27 = vlaneseq
    %v28 = vshrl.u32 %v27, 7
    %v29 = vsub.s32 0, %v28
    %v30 = vrot.slane %v25, %v29
    %v31 = vlaneseq
    %v32 = vshrl.u32 %v31, 7
    %v33 = vsub.s32 1, %v32
    %v34 = vrot.slane %v25, %v33
    %v35 = vlaneseq
    %v36 = vshrl.u32 %v35, 7
    %v37 = vsub.s32 2, %v36
    %v38 = vrot.slane %v25, %v37
    %v39 = vlaneseq
    %v40 = vshrl.u32 %v39, 7
    %v41 = vsub.s32 3, %v40
    %v42 = vrot.slane %v25, %v41
    %v49 = vunpack.c.l.b16 %v23
    %v50 = vunpack.c.h.b16 %v23
    %v51 = vunpack.c.l.b16 %v24
    %v52 = vunpack.c.h.b16 %v24
    %v53 = vpack.c.b16 %v49, %v49
    %v54 = vpack.c.b16 %v50, %v50
    %v55 = vpack.c.b16 %v51, %v51
    %v56 = vpack.c.b16 %v52, %v52
    %vm57 = vcmask 64512
    %v59 = vsel %vm57, %v22, 0
    %vm61 = vcmask 1043456
    %v63 = vsel %vm61, %v53, 0
    %v66 = vsel %vm61, %v54, 0
    %v69 = vsel %vm61, %v55, 0
    %v72 = vsel %vm61, %v56, 0
    %74 = vmatprep.subr.bf16.mxu0 %v66
    %75 = vmatpush1.bf16.msra.mxu0 %v63
    %76 = vmatprep.subr.bf16.mxu0 0
    %77 = vmatpush1.bf16.msra.mxu0 0
    %78 = vmatprep.subr.bf16.mxu0 0
    %79 = vmatpush1.bf16.msra.mxu0 0
    %80 = vmatprep.subr.bf16.mxu0 0
    %81 = vmatpush1.bf16.msra.mxu0 0
    %82 = vmatprep.subr.bf16.mxu0 0
    %83 = vmatpush1.bf16.msra.mxu0 0
    %84 = vmatprep.subr.bf16.mxu0 0
    %85 = vmatpush1.bf16.msra.mxu0 0
    %86 = vmatprep.subr.bf16.mxu0 0
    %87 = vmatpush1.bf16.msra.mxu0 0
    %88 = vmatprep.subr.bf16.mxu0 0
    %89 = vmatpush1.bf16.msra.mxu0 0
    %90 = vmatprep.subr.bf16.mxu0 0
    %91 = vmatpush1.bf16.msra.mxu0 0
    %92 = vmatprep.subr.bf16.mxu0 0
    %93 = vmatpush1.bf16.msra.mxu0 0
    %94 = vmatprep.subr.bf16.mxu0 0
    %95 = vmatpush1.bf16.msra.mxu0 0
    %96 = vmatprep.subr.bf16.mxu0 0
    %97 = vmatpush1.bf16.msra.mxu0 0
    %98 = vmatprep.subr.bf16.mxu0 0
    %99 = vmatpush1.bf16.msra.mxu0 0
    %100 = vmatprep.subr.bf16.mxu0 0
    %101 = vmatpush1.bf16.msra.mxu0 0
    %102 = vmatprep.subr.bf16.mxu0 0
    %103 = vmatpush1.bf16.msra.mxu0 0
    %104 = vmatprep.subr.bf16.mxu0 0
    %105 = vmatpush1.bf16.msra.mxu0 0
    %106 = vmatprep.mubr.bf16.mxu0 0
    %107 = vmatmul.mubr.bf16.gmra.mrb[0].mxu0 %v59
    %v108 = vpop.f32.mrb[0].mxu0
    %v109 = vadd.f32 %v30, %v108
    %v110 = vpop.f32.mrb[0].mxu0
    %v111 = vadd.f32 %v34, %v110
    %v112 = vpop.f32.mrb[0].mxu0
    %v113 = vpop.f32.mrb[0].mxu0
    %114 = vdwg.mxu0
    %115 = vmatprep.subr.bf16.mxu0 %v72
    %116 = vmatpush1.bf16.msra.mxu0 %v69
    %117 = vmatprep.subr.bf16.mxu0 0
    %118 = vmatpush1.bf16.msra.mxu0 0
    %119 = vmatprep.subr.bf16.mxu0 0
    %120 = vmatpush1.bf16.msra.mxu0 0
    %121 = vmatprep.subr.bf16.mxu0 0
    %122 = vmatpush1.bf16.msra.mxu0 0
    %123 = vmatprep.subr.bf16.mxu0 0
    %124 = vmatpush1.bf16.msra.mxu0 0
    %125 = vmatprep.subr.bf16.mxu0 0
    %126 = vmatpush1.bf16.msra.mxu0 0
    %127 = vmatprep.subr.bf16.mxu0 0
    %128 = vmatpush1.bf16.msra.mxu0 0
    %129 = vmatprep.subr.bf16.mxu0 0
    %130 = vmatpush1.bf16.msra.mxu0 0
    %131 = vmatprep.subr.bf16.mxu0 0
    %132 = vmatpush1.bf16.msra.mxu0 0
    %133 = vmatprep.subr.bf16.mxu0 0
    %134 = vmatpush1.bf16.msra.mxu0 0
    %135 = vmatprep.subr.bf16.mxu0 0
    %136 = vmatpush1.bf16.msra.mxu0 0
    %137 = vmatprep.subr.bf16.mxu0 0
    %138 = vmatpush1.bf16.msra.mxu0 0
    %139 = vmatprep.subr.bf16.mxu0 0
    %140 = vmatpush1.bf16.msra.mxu0 0
    %141 = vmatprep.subr.bf16.mxu0 0
    %142 = vmatpush1.bf16.msra.mxu0 0
    %143 = vmatprep.subr.bf16.mxu0 0
    %144 = vmatpush1.bf16.msra.mxu0 0
    %145 = vmatprep.subr.bf16.mxu0 0
    %146 = vmatpush1.bf16.msra.mxu0 0
    %147 = vmatprep.mubr.bf16.mxu0 0
    %148 = vmatmul.mubr.bf16.gmra.mrb[0].mxu0 %v59
    %v149 = vpop.f32.mrb[0].mxu0
    %v150 = vadd.f32 %v38, %v149
    %v151 = vpop.f32.mrb[0].mxu0
    %v152 = vadd.f32 %v42, %v151
    %v153 = vpop.f32.mrb[0].mxu0
    %v154 = vpop.f32.mrb[0].mxu0
    %155 = vdwg.mxu0
    %v156 = vmax.f32 %v109, 0.0
    %v157 = vmax.f32 %v111, 0.0
    %v158 = vmax.f32 %v150, 0.0
    %v159 = vmax.f32 %v152, 0.0
    %v160 = vpack.c.bf16 %v156, %v156
    %v161 = vpack.c.bf16 %v157, %v157
    %v162 = vpack.c.bf16 %v158, %v158
    %v163 = vpack.c.bf16 %v159, %v159
    %v164 = vld [vmem:[%s3] sm:$0xff]
    %v165 = vld [vmem:[%s3 + $0x8] sm:$0xff]
    %v166 = vld [vmem:[%s3 + $0x10] sm:$0xff]
    %v167 = vld [vmem:[%s3 + $0x18] sm:$0xf]
    %v168 = vld [vmem:[%s3 + $0x1c] sm:$0xff]
    %v169 = vld [vmem:[%s3 + $0x24] sm:$0xff]
    %v170 = vld [vmem:[%s3 + $0x2c] sm:$0xff]
    %v171 = vld [vmem:[%s3 + $0x34] sm:$0xf]
    %v172 = vld [vmem:[%s3 + $0x38] sm:$0xff]
    %v173 = vld [vmem:[%s3 + $0x40] sm:$0xff]
    %v174 = vld [vmem:[%s3 + $0x48] sm:$0xff]
    %v175 = vld [vmem:[%s3 + $0x50] sm:$0xf]
    %v176 = vld [vmem:[%s3 + $0x54] sm:$0xff]
    %v177 = vld [vmem:[%s3 + $0x5c] sm:$0xff]
    %v178 = vld [vmem:[%s3 + $0x64] sm:$0xff]
    %v179 = vld [vmem:[%s3 + $0x6c] sm:$0xf]
    %v180 = vld [vmem:[%s3 + $0x70] sm:$0xff]
    %v181 = vld [vmem:[%s3 + $0x78] sm:$0xff]
    %v182 = vld [vmem:[%s3 + $0x80] sm:$0xff]
    %v183 = vld [vmem:[%s3 + $0x88] sm:$0xf]
    %v184 = vld [vmem:[%s3 + $0x8c] sm:$0xff]
    %v185 = vld [vmem:[%s3 + $0x94] sm:$0xff]
    %v186 = vld [vmem:[%s3 + $0x9c] sm:$0xff]
    %v187 = vld [vmem:[%s3 + $0xa4] sm:$0xf]
    %v188 = vld [vmem:[%s3 + $0xa8] sm:$0xff]
    %v189 = vld [vmem:[%s3 + $0xb0] sm:$0xff]
    %v190 = vld [vmem:[%s3 + $0xb8] sm:$0xff]
    %v191 = vld [vmem:[%s3 + $0xc0] sm:$0xf]
    %v192 = vld [vmem:[%s3 + $0xc4] sm:$0xff]
    %v193 = vld [vmem:[%s3 + $0xcc] sm:$0xff]
    %v194 = vld [vmem:[%s3 + $0xd4] sm:$0xff]
    %v195 = vld [vmem:[%s3 + $0xdc] sm:$0xf]
    %v196 = vld [vmem:[%s3 + $0xe0] sm:$0xff]
    %v197 = vld [vmem:[%s3 + $0xe8] sm:$0xff]
    %v198 = vld [vmem:[%s3 + $0xf0] sm:$0xff]
    %v199 = vld [vmem:[%s3 + $0xf8] sm:$0xf]
    %v200 = vld [vmem:[%s3 + $0xfc] sm:$0xff]
    %v201 = vld [vmem:[%s3 + $0x104] sm:$0xff]
    %v202 = vld [vmem:[%s3 + $0x10c] sm:$0xff]
    %v203 = vld [vmem:[%s3 + $0x114] sm:$0xf]
    %v204 = vld [vmem:[%s3 + $0x118] sm:$0xff]
    %v205 = vld [vmem:[%s3 + $0x120] sm:$0xff]
    %v206 = vld [vmem:[%s3 + $0x128] sm:$0xff]
    %v207 = vld [vmem:[%s3 + $0x130] sm:$0xf]
    %v208 = vld [vmem:[%s3 + $0x134] sm:$0xff]
    %v209 = vld [vmem:[%s3 + $0x13c] sm:$0xff]
    %v210 = vld [vmem:[%s3 + $0x144] sm:$0xff]
    %v211 = vld [vmem:[%s3 + $0x14c] sm:$0xf]
    %v212 = vld [vmem:[%s3 + $0x150] sm:$0xff]
    %v213 = vld [vmem:[%s3 + $0x158] sm:$0xff]
    %v214 = vld [vmem:[%s3 + $0x160] sm:$0xff]
    %v215 = vld [vmem:[%s3 + $0x168] sm:$0xf]
    %v216 = vld [vmem:[%s3 + $0x16c] sm:$0xff]
    %v217 = vld [vmem:[%s3 + $0x174] sm:$0xff]
    %v218 = vld [vmem:[%s3 + $0x17c] sm:$0xff]
    %v219 = vld [vmem:[%s3 + $0x184] sm:$0xf]
    %v220 = vld [vmem:[%s3 + $0x188] sm:$0xff]
    %v221 = vld [vmem:[%s3 + $0x190] sm:$0xff]
    %v222 = vld [vmem:[%s3 + $0x198] sm:$0xff]
    %v223 = vld [vmem:[%s3 + $0x1a0] sm:$0xf]
    %v224 = vld [vmem:[%s3 + $0x1a4] sm:$0xff]
    %v225 = vld [vmem:[%s3 + $0x1ac] sm:$0xff]
    %v226 = vld [vmem:[%s3 + $0x1b4] sm:$0xff]
    %v227 = vld [vmem:[%s3 + $0x1bc] sm:$0xf]
    %v228 = vld [vmem:[%s3 + $0x1c0] sm:$0xff]
    %v229 = vld [vmem:[%s3 + $0x1c8] sm:$0xff]
    %v230 = vld [vmem:[%s3 + $0x1d0] sm:$0xff]
    %v231 = vld [vmem:[%s3 + $0x1d8] sm:$0xf]
    %v232 = vld [vmem:[%s3 + $0x1dc] sm:$0xff]
    %v233 = vld [vmem:[%s3 + $0x1e4] sm:$0xff]
    %v234 = vld [vmem:[%s3 + $0x1ec] sm:$0xff]
    %v235 = vld [vmem:[%s3 + $0x1f4] sm:$0xf]
    %v236 = vld [vmem:[%s3 + $0x1f8] sm:$0xff]
    %v237 = vld [vmem:[%s3 + $0x200] sm:$0xff]
    %v238 = vld [vmem:[%s3 + $0x208] sm:$0xff]
    %v239 = vld [vmem:[%s3 + $0x210] sm:$0xf]
    %v240 = vld [vmem:[%s3 + $0x214] sm:$0xff]
    %v241 = vld [vmem:[%s3 + $0x21c] sm:$0xff]
    %v242 = vld [vmem:[%s3 + $0x224] sm:$0xff]
    %v243 = vld [vmem:[%s3 + $0x22c] sm:$0xf]
    %v244 = vld [vmem:[%s3 + $0x230] sm:$0xff]
    %v245 = vld [vmem:[%s3 + $0x238] sm:$0xff]
    %v246 = vld [vmem:[%s3 + $0x240] sm:$0xff]
    %v247 = vld [vmem:[%s3 + $0x248] sm:$0xf]
    %v248 = vld [vmem:[%s3 + $0x24c] sm:$0xff]
    %v249 = vld [vmem:[%s3 + $0x254] sm:$0xff]
    %v250 = vld [vmem:[%s3 + $0x25c] sm:$0xff]
    %v251 = vld [vmem:[%s3 + $0x264] sm:$0xf]
    %v252 = vld [vmem:[%s3 + $0x268] sm:$0xff]
    %v253 = vld [vmem:[%s3 + $0x270] sm:$0xff]
    %v254 = vld [vmem:[%s3 + $0x278] sm:$0xff]
    %v255 = vld [vmem:[%s3 + $0x280] sm:$0xf]
    %v256 = vld [vmem:[%s3 + $0x284] sm:$0xff]
    %v257 = vld [vmem:[%s3 + $0x28c] sm:$0xff]
    %v258 = vld [vmem:[%s3 + $0x294] sm:$0xff]
    %v259 = vld [vmem:[%s3 + $0x29c] sm:$0xf]
    %v260 = vld [vmem:[%s3 + $0x2a0] sm:$0xff]
    %v261 = vld [vmem:[%s3 + $0x2a8] sm:$0xff]
    %v262 = vld [vmem:[%s3 + $0x2b0] sm:$0xff]
    %v263 = vld [vmem:[%s3 + $0x2b8] sm:$0xf]
    %v264 = vld [vmem:[%s3 + $0x2bc] sm:$0xff]
    %v265 = vld [vmem:[%s3 + $0x2c4] sm:$0xff]
    %v266 = vld [vmem:[%s3 + $0x2cc] sm:$0xff]
    %v267 = vld [vmem:[%s3 + $0x2d4] sm:$0xf]
    %v268 = vld [vmem:[%s3 + $0x2d8] sm:$0xff]
    %v269 = vld [vmem:[%s3 + $0x2e0] sm:$0xff]
    %v270 = vld [vmem:[%s3 + $0x2e8] sm:$0xff]
    %v271 = vld [vmem:[%s3 + $0x2f0] sm:$0xf]
    %v272 = vld [vmem:[%s3 + $0x2f4] sm:$0xff]
    %v273 = vld [vmem:[%s3 + $0x2fc] sm:$0xff]
    %v274 = vld [vmem:[%s3 + $0x304] sm:$0xff]
    %v275 = vld [vmem:[%s3 + $0x30c] sm:$0xf]
    %v276 = vld [vmem:[%s3 + $0x310] sm:$0xff]
    %v277 = vld [vmem:[%s3 + $0x318] sm:$0xff]
    %v278 = vld [vmem:[%s3 + $0x320] sm:$0xff]
    %v279 = vld [vmem:[%s3 + $0x328] sm:$0xf]
    %v280 = vld [vmem:[%s3 + $0x32c] sm:$0xff]
    %v281 = vld [vmem:[%s3 + $0x334] sm:$0xff]
    %v282 = vld [vmem:[%s3 + $0x33c] sm:$0xff]
    %v283 = vld [vmem:[%s3 + $0x344] sm:$0xf]
    %v284 = vld [vmem:[%s3 + $0x348] sm:$0xff]
    %v285 = vld [vmem:[%s3 + $0x350] sm:$0xff]
    %v286 = vld [vmem:[%s3 + $0x358] sm:$0xff]
    %v287 = vld [vmem:[%s3 + $0x360] sm:$0xf]
    %v288 = vld [vmem:[%s3 + $0x364] sm:$0xff]
    %v289 = vld [vmem:[%s3 + $0x36c] sm:$0xff]
    %v290 = vld [vmem:[%s3 + $0x374] sm:$0xff]
    %v291 = vld [vmem:[%s3 + $0x37c] sm:$0xf]
    %v292 = vld [vmem:[%s3 + $0x380] sm:$0xff]
    %v293 = vld [vmem:[%s3 + $0x388] sm:$0xff]
    %v294 = vld [vmem:[%s3 + $0x390] sm:$0xff]
    %v295 = vld [vmem:[%s3 + $0x398] sm:$0xf]
    %v296 = vld [vmem:[%s3 + $0x39c] sm:$0xff]
    %v297 = vld [vmem:[%s3 + $0x3a4] sm:$0xff]
    %v298 = vld [vmem:[%s3 + $0x3ac] sm:$0xff]
    %v299 = vld [vmem:[%s3 + $0x3b4] sm:$0xf]
    %v300 = vld [vmem:[%s3 + $0x3b8] sm:$0xff]
    %v301 = vld [vmem:[%s3 + $0x3c0] sm:$0xff]
    %v302 = vld [vmem:[%s3 + $0x3c8] sm:$0xff]
    %v303 = vld [vmem:[%s3 + $0x3d0] sm:$0xf]
    %v304 = vld [vmem:[%s3 + $0x3d4] sm:$0xff]
    %v305 = vld [vmem:[%s3 + $0x3dc] sm:$0xff]
    %v306 = vld [vmem:[%s3 + $0x3e4] sm:$0xff]
    %v307 = vld [vmem:[%s3 + $0x3ec] sm:$0xf]
    %v308 = vld [vmem:[%s3 + $0x3f0] sm:$0xff]
    %v309 = vld [vmem:[%s3 + $0x3f8] sm:$0xff]
    %v310 = vld [vmem:[%s3 + $0x400] sm:$0xff]
    %v311 = vld [vmem:[%s3 + $0x408] sm:$0xf]
    %v312 = vld [vmem:[%s3 + $0x40c] sm:$0xff]
    %v313 = vld [vmem:[%s3 + $0x414] sm:$0xff]
    %v314 = vld [vmem:[%s3 + $0x41c] sm:$0xff]
    %v315 = vld [vmem:[%s3 + $0x424] sm:$0xf]
    %v316 = vld [vmem:[%s3 + $0x428] sm:$0xff]
    %v317 = vld [vmem:[%s3 + $0x430] sm:$0xff]
    %v318 = vld [vmem:[%s3 + $0x438] sm:$0xff]
    %v319 = vld [vmem:[%s3 + $0x440] sm:$0xf]
    %v320 = vld [vmem:[%s3 + $0x444] sm:$0xff]
    %v321 = vld [vmem:[%s3 + $0x44c] sm:$0xff]
    %v322 = vld [vmem:[%s3 + $0x454] sm:$0xff]
    %v323 = vld [vmem:[%s3 + $0x45c] sm:$0xf]
    %v324 = vld [vmem:[%s3 + $0x460] sm:$0xff]
    %v325 = vld [vmem:[%s3 + $0x468] sm:$0xff]
    %v326 = vld [vmem:[%s3 + $0x470] sm:$0xff]
    %v327 = vld [vmem:[%s3 + $0x478] sm:$0xf]
    %v328 = vld [vmem:[%s3 + $0x47c] sm:$0xff]
    %v329 = vld [vmem:[%s3 + $0x484] sm:$0xff]
    %v330 = vld [vmem:[%s3 + $0x48c] sm:$0xff]
    %v331 = vld [vmem:[%s3 + $0x494] sm:$0xf]
    %v332 = vld [vmem:[%s3 + $0x498] sm:$0xff]
    %v333 = vld [vmem:[%s3 + $0x4a0] sm:$0xff]
    %v334 = vld [vmem:[%s3 + $0x4a8] sm:$0xff]
    %v335 = vld [vmem:[%s3 + $0x4b0] sm:$0xf]
    %v336 = vld [vmem:[%s3 + $0x4b4] sm:$0xff]
    %v337 = vld [vmem:[%s3 + $0x4bc] sm:$0xff]
    %v338 = vld [vmem:[%s3 + $0x4c4] sm:$0xff]
    %v339 = vld [vmem:[%s3 + $0x4cc] sm:$0xf]
    %v340 = vld [vmem:[%s3 + $0x4d0] sm:$0xff]
    %v341 = vld [vmem:[%s3 + $0x4d8] sm:$0xff]
    %v342 = vld [vmem:[%s3 + $0x4e0] sm:$0xff]
    %v343 = vld [vmem:[%s3 + $0x4e8] sm:$0xf]
    %v344 = vld [vmem:[%s3 + $0x4ec] sm:$0xff]
    %v345 = vld [vmem:[%s3 + $0x4f4] sm:$0xff]
    %v346 = vld [vmem:[%s3 + $0x4fc] sm:$0xff]
    %v347 = vld [vmem:[%s3 + $0x504] sm:$0xf]
    %v348 = vld [vmem:[%s3 + $0x508] sm:$0xff]
    %v349 = vld [vmem:[%s3 + $0x510] sm:$0xff]
    %v350 = vld [vmem:[%s3 + $0x518] sm:$0xff]
    %v351 = vld [vmem:[%s3 + $0x520] sm:$0xf]
    %v352 = vld [vmem:[%s3 + $0x524] sm:$0xff]
    %v353 = vld [vmem:[%s3 + $0x52c] sm:$0xff]
    %v354 = vld [vmem:[%s3 + $0x534] sm:$0xff]
    %v355 = vld [vmem:[%s3 + $0x53c] sm:$0xf]
    %v356 = vld [vmem:[%s3 + $0x540] sm:$0xff]
    %v357 = vld [vmem:[%s3 + $0x548] sm:$0xff]
    %v358 = vld [vmem:[%s3 + $0x550] sm:$0xff]
    %v359 = vld [vmem:[%s3 + $0x558] sm:$0xf]
    %v360 = vld [vmem:[%s3 + $0x55c] sm:$0xff]
    %v361 = vld [vmem:[%s3 + $0x564] sm:$0xff]
    %v362 = vld [vmem:[%s3 + $0x56c] sm:$0xff]
    %v363 = vld [vmem:[%s3 + $0x574] sm:$0xf]
    %v364 = vld [vmem:[%s3 + $0x578] sm:$0xff]
    %v365 = vld [vmem:[%s3 + $0x580] sm:$0xff]
    %v366 = vld [vmem:[%s3 + $0x588] sm:$0xff]
    %v367 = vld [vmem:[%s3 + $0x590] sm:$0xf]
    %v368 = vld [vmem:[%s3 + $0x594] sm:$0xff]
    %v369 = vld [vmem:[%s3 + $0x59c] sm:$0xff]
    %v370 = vld [vmem:[%s3 + $0x5a4] sm:$0xff]
    %v371 = vld [vmem:[%s3 + $0x5ac] sm:$0xf]
    %v372 = vld [vmem:[%s3 + $0x5b0] sm:$0xff]
    %v373 = vld [vmem:[%s3 + $0x5b8] sm:$0xff]
    %v374 = vld [vmem:[%s3 + $0x5c0] sm:$0xff]
    %v375 = vld [vmem:[%s3 + $0x5c8] sm:$0xf]
    %v376 = vld [vmem:[%s3 + $0x5cc] sm:$0xff]
    %v377 = vld [vmem:[%s3 + $0x5d4] sm:$0xff]
    %v378 = vld [vmem:[%s3 + $0x5dc] sm:$0xff]
    %v379 = vld [vmem:[%s3 + $0x5e4] sm:$0xf]
    %v380 = vld [vmem:[%s3 + $0x5e8] sm:$0xff]
    %v381 = vld [vmem:[%s3 + $0x5f0] sm:$0xff]
    %v382 = vld [vmem:[%s3 + $0x5f8] sm:$0xff]
    %v383 = vld [vmem:[%s3 + $0x600] sm:$0xf]
    %v384 = vld [vmem:[%s3 + $0x604] sm:$0xff]
    %v385 = vld [vmem:[%s3 + $0x60c] sm:$0xff]
    %v386 = vld [vmem:[%s3 + $0x614] sm:$0xff]
    %v387 = vld [vmem:[%s3 + $0x61c] sm:$0xf]
    %v388 = vld [vmem:[%s3 + $0x620] sm:$0xff]
    %v389 = vld [vmem:[%s3 + $0x628] sm:$0xff]
    %v390 = vld [vmem:[%s3 + $0x630] sm:$0xff]
    %v391 = vld [vmem:[%s3 + $0x638] sm:$0xf]
    %v392 = vld [vmem:[%s3 + $0x63c] sm:$0xff]
    %v393 = vld [vmem:[%s3 + $0x644] sm:$0xff]
    %v394 = vld [vmem:[%s3 + $0x64c] sm:$0xff]
    %v395 = vld [vmem:[%s3 + $0x654] sm:$0xf]
    %v396 = vld [vmem:[%s3 + $0x658] sm:$0xff]
    %v397 = vld [vmem:[%s3 + $0x660] sm:$0xff]
    %v398 = vld [vmem:[%s3 + $0x668] sm:$0xff]
    %v399 = vld [vmem:[%s3 + $0x670] sm:$0xf]
    %v400 = vld [vmem:[%s3 + $0x674] sm:$0xff]
    %v401 = vld [vmem:[%s3 + $0x67c] sm:$0xff]
    %v402 = vld [vmem:[%s3 + $0x684] sm:$0xff]
    %v403 = vld [vmem:[%s3 + $0x68c] sm:$0xf]
    %v404 = vld [vmem:[%s3 + $0x690] sm:$0xff]
    %v405 = vld [vmem:[%s3 + $0x698] sm:$0xff]
    %v406 = vld [vmem:[%s3 + $0x6a0] sm:$0xff]
    %v407 = vld [vmem:[%s3 + $0x6a8] sm:$0xf]
    %v408 = vld [vmem:[%s3 + $0x6ac] sm:$0xff]
    %v409 = vld [vmem:[%s3 + $0x6b4] sm:$0xff]
    %v410 = vld [vmem:[%s3 + $0x6bc] sm:$0xff]
    %v411 = vld [vmem:[%s3 + $0x6c4] sm:$0xf]
    %v412 = vld [vmem:[%s3 + $0x6c8] sm:$0xff]
    %v413 = vld [vmem:[%s3 + $0x6d0] sm:$0xff]
    %v414 = vld [vmem:[%s3 + $0x6d8] sm:$0xff]
    %v415 = vld [vmem:[%s3 + $0x6e0] sm:$0xf]
    %v416 = vld [vmem:[%s3 + $0x6e4] sm:$0xff]
    %v417 = vld [vmem:[%s3 + $0x6ec] sm:$0xff]
    %v418 = vld [vmem:[%s3 + $0x6f4] sm:$0xff]
    %v419 = vld [vmem:[%s3 + $0x6fc] sm:$0xf]
    %v420 = vld [vmem:[%s4] sm:$0x7f]
    %v422 = vlaneseq
    %v423 = vshrl.u32 %v422, 7
    %v424 = vsub.s32 0, %v423
    %v425 = vrot.slane %v420, %v424
    %v426 = vlaneseq
    %v427 = vshrl.u32 %v426, 7
    %v428 = vsub.s32 1, %v427
    %v429 = vrot.slane %v420, %v428
    %v430 = vlaneseq
    %v431 = vshrl.u32 %v430, 7
    %v432 = vsub.s32 2, %v431
    %v433 = vrot.slane %v420, %v432
    %v434 = vlaneseq
    %v435 = vshrl.u32 %v434, 7
    %v436 = vsub.s32 3, %v435
    %v437 = vrot.slane %v420, %v436
    %v438 = vlaneseq
    %v439 = vshrl.u32 %v438, 7
    %v440 = vsub.s32 4, %v439
    %v441 = vrot.slane %v420, %v440
    %v442 = vlaneseq
    %v443 = vshrl.u32 %v442, 7
    %v444 = vsub.s32 5, %v443
    %v445 = vrot.slane %v420, %v444
    %v446 = vlaneseq
    %v447 = vshrl.u32 %v446, 7
    %v448 = vsub.s32 6, %v447
    %v449 = vrot.slane %v420, %v448
    %v713 = vunpack.c.l.b16 %v164
    %v714 = vunpack.c.h.b16 %v164
    %v715 = vunpack.c.l.b16 %v165
    %v716 = vunpack.c.h.b16 %v165
    %v717 = vunpack.c.l.b16 %v166
    %v718 = vunpack.c.h.b16 %v166
    %v719 = vunpack.c.l.b16 %v167
    %v720 = vunpack.c.l.b16 %v168
    %v721 = vunpack.c.h.b16 %v168
    %v722 = vunpack.c.l.b16 %v169
    %v723 = vunpack.c.h.b16 %v169
    %v724 = vunpack.c.l.b16 %v170
    %v725 = vunpack.c.h.b16 %v170
    %v726 = vunpack.c.l.b16 %v171
    %v727 = vunpack.c.l.b16 %v172
    %v728 = vunpack.c.h.b16 %v172
    %v729 = vunpack.c.l.b16 %v173
    %v730 = vunpack.c.h.b16 %v173
    %v731 = vunpack.c.l.b16 %v174
    %v732 = vunpack.c.h.b16 %v174
    %v733 = vunpack.c.l.b16 %v175
    %v734 = vunpack.c.l.b16 %v176
    %v735 = vunpack.c.h.b16 %v176
    %v736 = vunpack.c.l.b16 %v177
    %v737 = vunpack.c.h.b16 %v177
    %v738 = vunpack.c.l.b16 %v178
    %v739 = vunpack.c.h.b16 %v178
    %v740 = vunpack.c.l.b16 %v179
    %v741 = vunpack.c.l.b16 %v180
    %v742 = vunpack.c.h.b16 %v180
    %v743 = vunpack.c.l.b16 %v181
    %v744 = vunpack.c.h.b16 %v181
    %v745 = vunpack.c.l.b16 %v182
    %v746 = vunpack.c.h.b16 %v182
    %v747 = vunpack.c.l.b16 %v183
    %v748 = vunpack.c.l.b16 %v184
    %v749 = vunpack.c.h.b16 %v184
    %v750 = vunpack.c.l.b16 %v185
    %v751 = vunpack.c.h.b16 %v185
    %v752 = vunpack.c.l.b16 %v186
    %v753 = vunpack.c.h.b16 %v186
    %v754 = vunpack.c.l.b16 %v187
    %v755 = vunpack.c.l.b16 %v188
    %v756 = vunpack.c.h.b16 %v188
    %v757 = vunpack.c.l.b16 %v189
    %v758 = vunpack.c.h.b16 %v189
    %v759 = vunpack.c.l.b16 %v190
    %v760 = vunpack.c.h.b16 %v190
    %v761 = vunpack.c.l.b16 %v191
    %v762 = vunpack.c.l.b16 %v192
    %v763 = vunpack.c.h.b16 %v192
    %v764 = vunpack.c.l.b16 %v193
    %v765 = vunpack.c.h.b16 %v193
    %v766 = vunpack.c.l.b16 %v194
    %v767 = vunpack.c.h.b16 %v194
    %v768 = vunpack.c.l.b16 %v195
    %v769 = vunpack.c.l.b16 %v196
    %v770 = vunpack.c.h.b16 %v196
    %v771 = vunpack.c.l.b16 %v197
    %v772 = vunpack.c.h.b16 %v197
    %v773 = vunpack.c.l.b16 %v198
    %v774 = vunpack.c.h.b16 %v198
    %v775 = vunpack.c.l.b16 %v199
    %v776 = vunpack.c.l.b16 %v200
    %v777 = vunpack.c.h.b16 %v200
    %v778 = vunpack.c.l.b16 %v201
    %v779 = vunpack.c.h.b16 %v201
    %v780 = vunpack.c.l.b16 %v202
    %v781 = vunpack.c.h.b16 %v202
    %v782 = vunpack.c.l.b16 %v203
    %v783 = vunpack.c.l.b16 %v204
    %v784 = vunpack.c.h.b16 %v204
    %v785 = vunpack.c.l.b16 %v205
    %v786 = vunpack.c.h.b16 %v205
    %v787 = vunpack.c.l.b16 %v206
    %v788 = vunpack.c.h.b16 %v206
    %v789 = vunpack.c.l.b16 %v207
    %v790 = vunpack.c.l.b16 %v208
    %v791 = vunpack.c.h.b16 %v208
    %v792 = vunpack.c.l.b16 %v209
    %v793 = vunpack.c.h.b16 %v209
    %v794 = vunpack.c.l.b16 %v210
    %v795 = vunpack.c.h.b16 %v210
    %v796 = vunpack.c.l.b16 %v211
    %v797 = vunpack.c.l.b16 %v212
    %v798 = vunpack.c.h.b16 %v212
    %v799 = vunpack.c.l.b16 %v213
    %v800 = vunpack.c.h.b16 %v213
    %v801 = vunpack.c.l.b16 %v214
    %v802 = vunpack.c.h.b16 %v214
    %v803 = vunpack.c.l.b16 %v215
    %v804 = vunpack.c.l.b16 %v216
    %v805 = vunpack.c.h.b16 %v216
    %v806 = vunpack.c.l.b16 %v217
    %v807 = vunpack.c.h.b16 %v217
    %v808 = vunpack.c.l.b16 %v218
    %v809 = vunpack.c.h.b16 %v218
    %v810 = vunpack.c.l.b16 %v219
    %v811 = vunpack.c.l.b16 %v220
    %v812 = vunpack.c.h.b16 %v220
    %v813 = vunpack.c.l.b16 %v221
    %v814 = vunpack.c.h.b16 %v221
    %v815 = vunpack.c.l.b16 %v222
    %v816 = vunpack.c.h.b16 %v222
    %v817 = vunpack.c.l.b16 %v223
    %v818 = vunpack.c.l.b16 %v224
    %v819 = vunpack.c.h.b16 %v224
    %v820 = vunpack.c.l.b16 %v225
    %v821 = vunpack.c.h.b16 %v225
    %v822 = vunpack.c.l.b16 %v226
    %v823 = vunpack.c.h.b16 %v226
    %v824 = vunpack.c.l.b16 %v227
    %v825 = vunpack.c.l.b16 %v228
    %v826 = vunpack.c.h.b16 %v228
    %v827 = vunpack.c.l.b16 %v229
    %v828 = vunpack.c.h.b16 %v229
    %v829 = vunpack.c.l.b16 %v230
    %v830 = vunpack.c.h.b16 %v230
    %v831 = vunpack.c.l.b16 %v231
    %v832 = vunpack.c.l.b16 %v232
    %v833 = vunpack.c.h.b16 %v232
    %v834 = vunpack.c.l.b16 %v233
    %v835 = vunpack.c.h.b16 %v233
    %v836 = vunpack.c.l.b16 %v234
    %v837 = vunpack.c.h.b16 %v234
    %v838 = vunpack.c.l.b16 %v235
    %v839 = vunpack.c.l.b16 %v236
    %v840 = vunpack.c.h.b16 %v236
    %v841 = vunpack.c.l.b16 %v237
    %v842 = vunpack.c.h.b16 %v237
    %v843 = vunpack.c.l.b16 %v238
    %v844 = vunpack.c.h.b16 %v238
    %v845 = vunpack.c.l.b16 %v239
    %v846 = vunpack.c.l.b16 %v240
    %v847 = vunpack.c.h.b16 %v240
    %v848 = vunpack.c.l.b16 %v241
    %v849 = vunpack.c.h.b16 %v241
    %v850 = vunpack.c.l.b16 %v242
    %v851 = vunpack.c.h.b16 %v242
    %v852 = vunpack.c.l.b16 %v243
    %v853 = vunpack.c.l.b16 %v244
    %v854 = vunpack.c.h.b16 %v244
    %v855 = vunpack.c.l.b16 %v245
    %v856 = vunpack.c.h.b16 %v245
    %v857 = vunpack.c.l.b16 %v246
    %v858 = vunpack.c.h.b16 %v246
    %v859 = vunpack.c.l.b16 %v247
    %v860 = vunpack.c.l.b16 %v248
    %v861 = vunpack.c.h.b16 %v248
    %v862 = vunpack.c.l.b16 %v249
    %v863 = vunpack.c.h.b16 %v249
    %v864 = vunpack.c.l.b16 %v250
    %v865 = vunpack.c.h.b16 %v250
    %v866 = vunpack.c.l.b16 %v251
    %v867 = vunpack.c.l.b16 %v252
    %v868 = vunpack.c.h.b16 %v252
    %v869 = vunpack.c.l.b16 %v253
    %v870 = vunpack.c.h.b16 %v253
    %v871 = vunpack.c.l.b16 %v254
    %v872 = vunpack.c.h.b16 %v254
    %v873 = vunpack.c.l.b16 %v255
    %v874 = vunpack.c.l.b16 %v256
    %v875 = vunpack.c.h.b16 %v256
    %v876 = vunpack.c.l.b16 %v257
    %v877 = vunpack.c.h.b16 %v257
    %v878 = vunpack.c.l.b16 %v258
    %v879 = vunpack.c.h.b16 %v258
    %v880 = vunpack.c.l.b16 %v259
    %v881 = vunpack.c.l.b16 %v260
    %v882 = vunpack.c.h.b16 %v260
    %v883 = vunpack.c.l.b16 %v261
    %v884 = vunpack.c.h.b16 %v261
    %v885 = vunpack.c.l.b16 %v262
    %v886 = vunpack.c.h.b16 %v262
    %v887 = vunpack.c.l.b16 %v263
    %v888 = vunpack.c.l.b16 %v264
    %v889 = vunpack.c.h.b16 %v264
    %v890 = vunpack.c.l.b16 %v265
    %v891 = vunpack.c.h.b16 %v265
    %v892 = vunpack.c.l.b16 %v266
    %v893 = vunpack.c.h.b16 %v266
    %v894 = vunpack.c.l.b16 %v267
    %v895 = vunpack.c.l.b16 %v268
    %v896 = vunpack.c.h.b16 %v268
    %v897 = vunpack.c.l.b16 %v269
    %v898 = vunpack.c.h.b16 %v269
    %v899 = vunpack.c.l.b16 %v270
    %v900 = vunpack.c.h.b16 %v270
    %v901 = vunpack.c.l.b16 %v271
    %v902 = vunpack.c.l.b16 %v272
    %v903 = vunpack.c.h.b16 %v272
    %v904 = vunpack.c.l.b16 %v273
    %v905 = vunpack.c.h.b16 %v273
    %v906 = vunpack.c.l.b16 %v274
    %v907 = vunpack.c.h.b16 %v274
    %v908 = vunpack.c.l.b16 %v275
    %v909 = vunpack.c.l.b16 %v276
    %v910 = vunpack.c.h.b16 %v276
    %v911 = vunpack.c.l.b16 %v277
    %v912 = vunpack.c.h.b16 %v277
    %v913 = vunpack.c.l.b16 %v278
    %v914 = vunpack.c.h.b16 %v278
    %v915 = vunpack.c.l.b16 %v279
    %v916 = vunpack.c.l.b16 %v280
    %v917 = vunpack.c.h.b16 %v280
    %v918 = vunpack.c.l.b16 %v281
    %v919 = vunpack.c.h.b16 %v281
    %v920 = vunpack.c.l.b16 %v282
    %v921 = vunpack.c.h.b16 %v282
    %v922 = vunpack.c.l.b16 %v283
    %v923 = vunpack.c.l.b16 %v284
    %v924 = vunpack.c.h.b16 %v284
    %v925 = vunpack.c.l.b16 %v285
    %v926 = vunpack.c.h.b16 %v285
    %v927 = vunpack.c.l.b16 %v286
    %v928 = vunpack.c.h.b16 %v286
    %v929 = vunpack.c.l.b16 %v287
    %v930 = vunpack.c.l.b16 %v288
    %v931 = vunpack.c.h.b16 %v288
    %v932 = vunpack.c.l.b16 %v289
    %v933 = vunpack.c.h.b16 %v289
    %v934 = vunpack.c.l.b16 %v290
    %v935 = vunpack.c.h.b16 %v290
    %v936 = vunpack.c.l.b16 %v291
    %v937 = vunpack.c.l.b16 %v292
    %v938 = vunpack.c.h.b16 %v292
    %v939 = vunpack.c.l.b16 %v293
    %v940 = vunpack.c.h.b16 %v293
    %v941 = vunpack.c.l.b16 %v294
    %v942 = vunpack.c.h.b16 %v294
    %v943 = vunpack.c.l.b16 %v295
    %v944 = vunpack.c.l.b16 %v296
    %v945 = vunpack.c.h.b16 %v296
    %v946 = vunpack.c.l.b16 %v297
    %v947 = vunpack.c.h.b16 %v297
    %v948 = vunpack.c.l.b16 %v298
    %v949 = vunpack.c.h.b16 %v298
    %v950 = vunpack.c.l.b16 %v299
    %v951 = vunpack.c.l.b16 %v300
    %v952 = vunpack.c.h.b16 %v300
    %v953 = vunpack.c.l.b16 %v301
    %v954 = vunpack.c.h.b16 %v301
    %v955 = vunpack.c.l.b16 %v302
    %v956 = vunpack.c.h.b16 %v302
    %v957 = vunpack.c.l.b16 %v303
    %v958 = vunpack.c.l.b16 %v304
    %v959 = vunpack.c.h.b16 %v304
    %v960 = vunpack.c.l.b16 %v305
    %v961 = vunpack.c.h.b16 %v305
    %v962 = vunpack.c.l.b16 %v306
    %v963 = vunpack.c.h.b16 %v306
    %v964 = vunpack.c.l.b16 %v307
    %v965 = vunpack.c.l.b16 %v308
    %v966 = vunpack.c.h.b16 %v308
    %v967 = vunpack.c.l.b16 %v309
    %v968 = vunpack.c.h.b16 %v309
    %v969 = vunpack.c.l.b16 %v310
    %v970 = vunpack.c.h.b16 %v310
    %v971 = vunpack.c.l.b16 %v311
    %v972 = vunpack.c.l.b16 %v312
    %v973 = vunpack.c.h.b16 %v312
    %v974 = vunpack.c.l.b16 %v313
    %v975 = vunpack.c.h.b16 %v313
    %v976 = vunpack.c.l.b16 %v314
    %v977 = vunpack.c.h.b16 %v314
    %v978 = vunpack.c.l.b16 %v315
    %v979 = vunpack.c.l.b16 %v316
    %v980 = vunpack.c.h.b16 %v316
    %v981 = vunpack.c.l.b16 %v317
    %v982 = vunpack.c.h.b16 %v317
    %v983 = vunpack.c.l.b16 %v318
    %v984 = vunpack.c.h.b16 %v318
    %v985 = vunpack.c.l.b16 %v319
    %v986 = vunpack.c.l.b16 %v320
    %v987 = vunpack.c.h.b16 %v320
    %v988 = vunpack.c.l.b16 %v321
    %v989 = vunpack.c.h.b16 %v321
    %v990 = vunpack.c.l.b16 %v322
    %v991 = vunpack.c.h.b16 %v322
    %v992 = vunpack.c.l.b16 %v323
    %v993 = vunpack.c.l.b16 %v324
    %v994 = vunpack.c.h.b16 %v324
    %v995 = vunpack.c.l.b16 %v325
    %v996 = vunpack.c.h.b16 %v325
    %v997 = vunpack.c.l.b16 %v326
    %v998 = vunpack.c.h.b16 %v326
    %v999 = vunpack.c.l.b16 %v327
    %v1000 = vunpack.c.l.b16 %v328
    %v1001 = vunpack.c.h.b16 %v328
    %v1002 = vunpack.c.l.b16 %v329
    %v1003 = vunpack.c.h.b16 %v329
    %v1004 = vunpack.c.l.b16 %v330
    %v1005 = vunpack.c.h.b16 %v330
    %v1006 = vunpack.c.l.b16 %v331
    %v1007 = vunpack.c.l.b16 %v332
    %v1008 = vunpack.c.h.b16 %v332
    %v1009 = vunpack.c.l.b16 %v333
    %v1010 = vunpack.c.h.b16 %v333
    %v1011 = vunpack.c.l.b16 %v334
    %v1012 = vunpack.c.h.b16 %v334
    %v1013 = vunpack.c.l.b16 %v335
    %v1014 = vunpack.c.l.b16 %v336
    %v1015 = vunpack.c.h.b16 %v336
    %v1016 = vunpack.c.l.b16 %v337
    %v1017 = vunpack.c.h.b16 %v337
    %v1018 = vunpack.c.l.b16 %v338
    %v1019 = vunpack.c.h.b16 %v338
    %v1020 = vunpack.c.l.b16 %v339
    %v1021 = vunpack.c.l.b16 %v340
    %v1022 = vunpack.c.h.b16 %v340
    %v1023 = vunpack.c.l.b16 %v341
    %v1024 = vunpack.c.h.b16 %v341
    %v1025 = vunpack.c.l.b16 %v342
    %v1026 = vunpack.c.h.b16 %v342
    %v1027 = vunpack.c.l.b16 %v343
    %v1028 = vunpack.c.l.b16 %v344
    %v1029 = vunpack.c.h.b16 %v344
    %v1030 = vunpack.c.l.b16 %v345
    %v1031 = vunpack.c.h.b16 %v345
    %v1032 = vunpack.c.l.b16 %v346
    %v1033 = vunpack.c.h.b16 %v346
    %v1034 = vunpack.c.l.b16 %v347
    %v1035 = vunpack.c.l.b16 %v348
    %v1036 = vunpack.c.h.b16 %v348
    %v1037 = vunpack.c.l.b16 %v349
    %v1038 = vunpack.c.h.b16 %v349
    %v1039 = vunpack.c.l.b16 %v350
    %v1040 = vunpack.c.h.b16 %v350
    %v1041 = vunpack.c.l.b16 %v351
    %v1042 = vunpack.c.l.b16 %v352
    %v1043 = vunpack.c.h.b16 %v352
    %v1044 = vunpack.c.l.b16 %v353
    %v1045 = vunpack.c.h.b16 %v353
    %v1046 = vunpack.c.l.b16 %v354
    %v1047 = vunpack.c.h.b16 %v354
    %v1048 = vunpack.c.l.b16 %v355
    %v1049 = vunpack.c.l.b16 %v356
    %v1050 = vunpack.c.h.b16 %v356
    %v1051 = vunpack.c.l.b16 %v357
    %v1052 = vunpack.c.h.b16 %v357
    %v1053 = vunpack.c.l.b16 %v358
    %v1054 = vunpack.c.h.b16 %v358
    %v1055 = vunpack.c.l.b16 %v359
    %v1056 = vunpack.c.l.b16 %v360
    %v1057 = vunpack.c.h.b16 %v360
    %v1058 = vunpack.c.l.b16 %v361
    %v1059 = vunpack.c.h.b16 %v361
    %v1060 = vunpack.c.l.b16 %v362
    %v1061 = vunpack.c.h.b16 %v362
    %v1062 = vunpack.c.l.b16 %v363
    %v1063 = vunpack.c.l.b16 %v364
    %v1064 = vunpack.c.h.b16 %v364
    %v1065 = vunpack.c.l.b16 %v365
    %v1066 = vunpack.c.h.b16 %v365
    %v1067 = vunpack.c.l.b16 %v366
    %v1068 = vunpack.c.h.b16 %v366
    %v1069 = vunpack.c.l.b16 %v367
    %v1070 = vunpack.c.l.b16 %v368
    %v1071 = vunpack.c.h.b16 %v368
    %v1072 = vunpack.c.l.b16 %v369
    %v1073 = vunpack.c.h.b16 %v369
    %v1074 = vunpack.c.l.b16 %v370
    %v1075 = vunpack.c.h.b16 %v370
    %v1076 = vunpack.c.l.b16 %v371
    %v1077 = vunpack.c.l.b16 %v372
    %v1078 = vunpack.c.h.b16 %v372
    %v1079 = vunpack.c.l.b16 %v373
    %v1080 = vunpack.c.h.b16 %v373
    %v1081 = vunpack.c.l.b16 %v374
    %v1082 = vunpack.c.h.b16 %v374
    %v1083 = vunpack.c.l.b16 %v375
    %v1084 = vunpack.c.l.b16 %v376
    %v1085 = vunpack.c.h.b16 %v376
    %v1086 = vunpack.c.l.b16 %v377
    %v1087 = vunpack.c.h.b16 %v377
    %v1088 = vunpack.c.l.b16 %v378
    %v1089 = vunpack.c.h.b16 %v378
    %v1090 = vunpack.c.l.b16 %v379
    %v1091 = vunpack.c.l.b16 %v380
    %v1092 = vunpack.c.h.b16 %v380
    %v1093 = vunpack.c.l.b16 %v381
    %v1094 = vunpack.c.h.b16 %v381
    %v1095 = vunpack.c.l.b16 %v382
    %v1096 = vunpack.c.h.b16 %v382
    %v1097 = vunpack.c.l.b16 %v383
    %v1098 = vunpack.c.l.b16 %v384
    %v1099 = vunpack.c.h.b16 %v384
    %v1100 = vunpack.c.l.b16 %v385
    %v1101 = vunpack.c.h.b16 %v385
    %v1102 = vunpack.c.l.b16 %v386
    %v1103 = vunpack.c.h.b16 %v386
    %v1104 = vunpack.c.l.b16 %v387
    %v1105 = vunpack.c.l.b16 %v388
    %v1106 = vunpack.c.h.b16 %v388
    %v1107 = vunpack.c.l.b16 %v389
    %v1108 = vunpack.c.h.b16 %v389
    %v1109 = vunpack.c.l.b16 %v390
    %v1110 = vunpack.c.h.b16 %v390
    %v1111 = vunpack.c.l.b16 %v391
    %v1112 = vunpack.c.l.b16 %v392
    %v1113 = vunpack.c.h.b16 %v392
    %v1114 = vunpack.c.l.b16 %v393
    %v1115 = vunpack.c.h.b16 %v393
    %v1116 = vunpack.c.l.b16 %v394
    %v1117 = vunpack.c.h.b16 %v394
    %v1118 = vunpack.c.l.b16 %v395
    %v1119 = vunpack.c.l.b16 %v396
    %v1120 = vunpack.c.h.b16 %v396
    %v1121 = vunpack.c.l.b16 %v397
    %v1122 = vunpack.c.h.b16 %v397
    %v1123 = vunpack.c.l.b16 %v398
    %v1124 = vunpack.c.h.b16 %v398
    %v1125 = vunpack.c.l.b16 %v399
    %v1126 = vunpack.c.l.b16 %v400
    %v1127 = vunpack.c.h.b16 %v400
    %v1128 = vunpack.c.l.b16 %v401
    %v1129 = vunpack.c.h.b16 %v401
    %v1130 = vunpack.c.l.b16 %v402
    %v1131 = vunpack.c.h.b16 %v402
    %v1132 = vunpack.c.l.b16 %v403
    %v1133 = vunpack.c.l.b16 %v404
    %v1134 = vunpack.c.h.b16 %v404
    %v1135 = vunpack.c.l.b16 %v405
    %v1136 = vunpack.c.h.b16 %v405
    %v1137 = vunpack.c.l.b16 %v406
    %v1138 = vunpack.c.h.b16 %v406
    %v1139 = vunpack.c.l.b16 %v407
    %v1140 = vunpack.c.l.b16 %v408
    %v1141 = vunpack.c.h.b16 %v408
    %v1142 = vunpack.c.l.b16 %v409
    %v1143 = vunpack.c.h.b16 %v409
    %v1144 = vunpack.c.l.b16 %v410
    %v1145 = vunpack.c.h.b16 %v410
    %v1146 = vunpack.c.l.b16 %v411
    %v1147 = vunpack.c.l.b16 %v412
    %v1148 = vunpack.c.h.b16 %v412
    %v1149 = vunpack.c.l.b16 %v413
    %v1150 = vunpack.c.h.b16 %v413
    %v1151 = vunpack.c.l.b16 %v414
    %v1152 = vunpack.c.h.b16 %v414
    %v1153 = vunpack.c.l.b16 %v415
    %v1154 = vunpack.c.l.b16 %v416
    %v1155 = vunpack.c.h.b16 %v416
    %v1156 = vunpack.c.l.b16 %v417
    %v1157 = vunpack.c.h.b16 %v417
    %v1158 = vunpack.c.l.b16 %v418
    %v1159 = vunpack.c.h.b16 %v418
    %v1160 = vunpack.c.l.b16 %v419
    %v1161 = vpack.c.b16 %v720, %v713
    %v1162 = vpack.c.b16 %v721, %v714
    %v1163 = vpack.c.b16 %v722, %v715
    %v1164 = vpack.c.b16 %v723, %v716
    %v1165 = vpack.c.b16 %v724, %v717
    %v1166 = vpack.c.b16 %v725, %v718
    %v1167 = vpack.c.b16 %v726, %v719
    %v1168 = vpack.c.b16 %v734, %v727
    %v1169 = vpack.c.b16 %v735, %v728
    %v1170 = vpack.c.b16 %v736, %v729
    %v1171 = vpack.c.b16 %v737, %v730
    %v1172 = vpack.c.b16 %v738, %v731
    %v1173 = vpack.c.b16 %v739, %v732
    %v1174 = vpack.c.b16 %v740, %v733
    %v1175 = vpack.c.b16 %v748, %v741
    %v1176 = vpack.c.b16 %v749, %v742
    %v1177 = vpack.c.b16 %v750, %v743
    %v1178 = vpack.c.b16 %v751, %v744
    %v1179 = vpack.c.b16 %v752, %v745
    %v1180 = vpack.c.b16 %v753, %v746
    %v1181 = vpack.c.b16 %v754, %v747
    %v1182 = vpack.c.b16 %v762, %v755
    %v1183 = vpack.c.b16 %v763, %v756
    %v1184 = vpack.c.b16 %v764, %v757
    %v1185 = vpack.c.b16 %v765, %v758
    %v1186 = vpack.c.b16 %v766, %v759
    %v1187 = vpack.c.b16 %v767, %v760
    %v1188 = vpack.c.b16 %v768, %v761
    %v1189 = vpack.c.b16 %v776, %v769
    %v1190 = vpack.c.b16 %v777, %v770
    %v1191 = vpack.c.b16 %v778, %v771
    %v1192 = vpack.c.b16 %v779, %v772
    %v1193 = vpack.c.b16 %v780, %v773
    %v1194 = vpack.c.b16 %v781, %v774
    %v1195 = vpack.c.b16 %v782, %v775
    %v1196 = vpack.c.b16 %v790, %v783
    %v1197 = vpack.c.b16 %v791, %v784
    %v1198 = vpack.c.b16 %v792, %v785
    %v1199 = vpack.c.b16 %v793, %v786
    %v1200 = vpack.c.b16 %v794, %v787
    %v1201 = vpack.c.b16 %v795, %v788
    %v1202 = vpack.c.b16 %v796, %v789
    %v1203 = vpack.c.b16 %v804, %v797
    %v1204 = vpack.c.b16 %v805, %v798
    %v1205 = vpack.c.b16 %v806, %v799
    %v1206 = vpack.c.b16 %v807, %v800
    %v1207 = vpack.c.b16 %v808, %v801
    %v1208 = vpack.c.b16 %v809, %v802
    %v1209 = vpack.c.b16 %v810, %v803
    %v1210 = vpack.c.b16 %v818, %v811
    %v1211 = vpack.c.b16 %v819, %v812
    %v1212 = vpack.c.b16 %v820, %v813
    %v1213 = vpack.c.b16 %v821, %v814
    %v1214 = vpack.c.b16 %v822, %v815
    %v1215 = vpack.c.b16 %v823, %v816
    %v1216 = vpack.c.b16 %v824, %v817
    %v1217 = vpack.c.b16 %v832, %v825
    %v1218 = vpack.c.b16 %v833, %v826
    %v1219 = vpack.c.b16 %v834, %v827
    %v1220 = vpack.c.b16 %v835, %v828
    %v1221 = vpack.c.b16 %v836, %v829
    %v1222 = vpack.c.b16 %v837, %v830
    %v1223 = vpack.c.b16 %v838, %v831
    %v1224 = vpack.c.b16 %v846, %v839
    %v1225 = vpack.c.b16 %v847, %v840
    %v1226 = vpack.c.b16 %v848, %v841
    %v1227 = vpack.c.b16 %v849, %v842
    %v1228 = vpack.c.b16 %v850, %v843
    %v1229 = vpack.c.b16 %v851, %v844
    %v1230 = vpack.c.b16 %v852, %v845
    %v1231 = vpack.c.b16 %v860, %v853
    %v1232 = vpack.c.b16 %v861, %v854
    %v1233 = vpack.c.b16 %v862, %v855
    %v1234 = vpack.c.b16 %v863, %v856
    %v1235 = vpack.c.b16 %v864, %v857
    %v1236 = vpack.c.b16 %v865, %v858
    %v1237 = vpack.c.b16 %v866, %v859
    %v1238 = vpack.c.b16 %v874, %v867
    %v1239 = vpack.c.b16 %v875, %v868
    %v1240 = vpack.c.b16 %v876, %v869
    %v1241 = vpack.c.b16 %v877, %v870
    %v1242 = vpack.c.b16 %v878, %v871
    %v1243 = vpack.c.b16 %v879, %v872
    %v1244 = vpack.c.b16 %v880, %v873
    %v1245 = vpack.c.b16 %v888, %v881
    %v1246 = vpack.c.b16 %v889, %v882
    %v1247 = vpack.c.b16 %v890, %v883
    %v1248 = vpack.c.b16 %v891, %v884
    %v1249 = vpack.c.b16 %v892, %v885
    %v1250 = vpack.c.b16 %v893, %v886
    %v1251 = vpack.c.b16 %v894, %v887
    %v1252 = vpack.c.b16 %v902, %v895
    %v1253 = vpack.c.b16 %v903, %v896
    %v1254 = vpack.c.b16 %v904, %v897
    %v1255 = vpack.c.b16 %v905, %v898
    %v1256 = vpack.c.b16 %v906, %v899
    %v1257 = vpack.c.b16 %v907, %v900
    %v1258 = vpack.c.b16 %v908, %v901
    %v1259 = vpack.c.b16 %v916, %v909
    %v1260 = vpack.c.b16 %v917, %v910
    %v1261 = vpack.c.b16 %v918, %v911
    %v1262 = vpack.c.b16 %v919, %v912
    %v1263 = vpack.c.b16 %v920, %v913
    %v1264 = vpack.c.b16 %v921, %v914
    %v1265 = vpack.c.b16 %v922, %v915
    %v1266 = vpack.c.b16 %v930, %v923
    %v1267 = vpack.c.b16 %v931, %v924
    %v1268 = vpack.c.b16 %v932, %v925
    %v1269 = vpack.c.b16 %v933, %v926
    %v1270 = vpack.c.b16 %v934, %v927
    %v1271 = vpack.c.b16 %v935, %v928
    %v1272 = vpack.c.b16 %v936, %v929
    %v1273 = vpack.c.b16 %v944, %v937
    %v1274 = vpack.c.b16 %v945, %v938
    %v1275 = vpack.c.b16 %v946, %v939
    %v1276 = vpack.c.b16 %v947, %v940
    %v1277 = vpack.c.b16 %v948, %v941
    %v1278 = vpack.c.b16 %v949, %v942
    %v1279 = vpack.c.b16 %v950, %v943
    %v1280 = vpack.c.b16 %v958, %v951
    %v1281 = vpack.c.b16 %v959, %v952
    %v1282 = vpack.c.b16 %v960, %v953
    %v1283 = vpack.c.b16 %v961, %v954
    %v1284 = vpack.c.b16 %v962, %v955
    %v1285 = vpack.c.b16 %v963, %v956
    %v1286 = vpack.c.b16 %v964, %v957
    %v1287 = vpack.c.b16 %v972, %v965
    %v1288 = vpack.c.b16 %v973, %v966
    %v1289 = vpack.c.b16 %v974, %v967
    %v1290 = vpack.c.b16 %v975, %v968
    %v1291 = vpack.c.b16 %v976, %v969
    %v1292 = vpack.c.b16 %v977, %v970
    %v1293 = vpack.c.b16 %v978, %v971
    %v1294 = vpack.c.b16 %v986, %v979
    %v1295 = vpack.c.b16 %v987, %v980
    %v1296 = vpack.c.b16 %v988, %v981
    %v1297 = vpack.c.b16 %v989, %v982
    %v1298 = vpack.c.b16 %v990, %v983
    %v1299 = vpack.c.b16 %v991, %v984
    %v1300 = vpack.c.b16 %v992, %v985
    %v1301 = vpack.c.b16 %v1000, %v993
    %v1302 = vpack.c.b16 %v1001, %v994
    %v1303 = vpack.c.b16 %v1002, %v995
    %v1304 = vpack.c.b16 %v1003, %v996
    %v1305 = vpack.c.b16 %v1004, %v997
    %v1306 = vpack.c.b16 %v1005, %v998
    %v1307 = vpack.c.b16 %v1006, %v999
    %v1308 = vpack.c.b16 %v1014, %v1007
    %v1309 = vpack.c.b16 %v1015, %v1008
    %v1310 = vpack.c.b16 %v1016, %v1009
    %v1311 = vpack.c.b16 %v1017, %v1010
    %v1312 = vpack.c.b16 %v1018, %v1011
    %v1313 = vpack.c.b16 %v1019, %v1012
    %v1314 = vpack.c.b16 %v1020, %v1013
    %v1315 = vpack.c.b16 %v1028, %v1021
    %v1316 = vpack.c.b16 %v1029, %v1022
    %v1317 = vpack.c.b16 %v1030, %v1023
    %v1318 = vpack.c.b16 %v1031, %v1024
    %v1319 = vpack.c.b16 %v1032, %v1025
    %v1320 = vpack.c.b16 %v1033, %v1026
    %v1321 = vpack.c.b16 %v1034, %v1027
    %v1322 = vpack.c.b16 %v1042, %v1035
    %v1323 = vpack.c.b16 %v1043, %v1036
    %v1324 = vpack.c.b16 %v1044, %v1037
    %v1325 = vpack.c.b16 %v1045, %v1038
    %v1326 = vpack.c.b16 %v1046, %v1039
    %v1327 = vpack.c.b16 %v1047, %v1040
    %v1328 = vpack.c.b16 %v1048, %v1041
    %v1329 = vpack.c.b16 %v1056, %v1049
    %v1330 = vpack.c.b16 %v1057, %v1050
    %v1331 = vpack.c.b16 %v1058, %v1051
    %v1332 = vpack.c.b16 %v1059, %v1052
    %v1333 = vpack.c.b16 %v1060, %v1053
    %v1334 = vpack.c.b16 %v1061, %v1054
    %v1335 = vpack.c.b16 %v1062, %v1055
    %v1336 = vpack.c.b16 %v1070, %v1063
    %v1337 = vpack.c.b16 %v1071, %v1064
    %v1338 = vpack.c.b16 %v1072, %v1065
    %v1339 = vpack.c.b16 %v1073, %v1066
    %v1340 = vpack.c.b16 %v1074, %v1067
    %v1341 = vpack.c.b16 %v1075, %v1068
    %v1342 = vpack.c.b16 %v1076, %v1069
    %v1343 = vpack.c.b16 %v1084, %v1077
    %v1344 = vpack.c.b16 %v1085, %v1078
    %v1345 = vpack.c.b16 %v1086, %v1079
    %v1346 = vpack.c.b16 %v1087, %v1080
    %v1347 = vpack.c.b16 %v1088, %v1081
    %v1348 = vpack.c.b16 %v1089, %v1082
    %v1349 = vpack.c.b16 %v1090, %v1083
    %v1350 = vpack.c.b16 %v1098, %v1091
    %v1351 = vpack.c.b16 %v1099, %v1092
    %v1352 = vpack.c.b16 %v1100, %v1093
    %v1353 = vpack.c.b16 %v1101, %v1094
    %v1354 = vpack.c.b16 %v1102, %v1095
    %v1355 = vpack.c.b16 %v1103, %v1096
    %v1356 = vpack.c.b16 %v1104, %v1097
    %v1357 = vpack.c.b16 %v1112, %v1105
    %v1358 = vpack.c.b16 %v1113, %v1106
    %v1359 = vpack.c.b16 %v1114, %v1107
    %v1360 = vpack.c.b16 %v1115, %v1108
    %v1361 = vpack.c.b16 %v1116, %v1109
    %v1362 = vpack.c.b16 %v1117, %v1110
    %v1363 = vpack.c.b16 %v1118, %v1111
    %v1364 = vpack.c.b16 %v1126, %v1119
    %v1365 = vpack.c.b16 %v1127, %v1120
    %v1366 = vpack.c.b16 %v1128, %v1121
    %v1367 = vpack.c.b16 %v1129, %v1122
    %v1368 = vpack.c.b16 %v1130, %v1123
    %v1369 = vpack.c.b16 %v1131, %v1124
    %v1370 = vpack.c.b16 %v1132, %v1125
    %v1371 = vpack.c.b16 %v1140, %v1133
    %v1372 = vpack.c.b16 %v1141, %v1134
    %v1373 = vpack.c.b16 %v1142, %v1135
    %v1374 = vpack.c.b16 %v1143, %v1136
    %v1375 = vpack.c.b16 %v1144, %v1137
    %v1376 = vpack.c.b16 %v1145, %v1138
    %v1377 = vpack.c.b16 %v1146, %v1139
    %v1378 = vpack.c.b16 %v1154, %v1147
    %v1379 = vpack.c.b16 %v1155, %v1148
    %v1380 = vpack.c.b16 %v1156, %v1149
    %v1381 = vpack.c.b16 %v1157, %v1150
    %v1382 = vpack.c.b16 %v1158, %v1151
    %v1383 = vpack.c.b16 %v1159, %v1152
    %v1384 = vpack.c.b16 %v1160, %v1153
    %1609 = vmatprep.subr.bf16.mxu0 %v1162
    %1610 = vmatpush1.bf16.msra.mxu0 %v1161
    %1611 = vmatprep.subr.bf16.mxu0 %v1169
    %1612 = vmatpush1.bf16.msra.mxu0 %v1168
    %1613 = vmatprep.subr.bf16.mxu0 %v1176
    %1614 = vmatpush1.bf16.msra.mxu0 %v1175
    %1615 = vmatprep.subr.bf16.mxu0 %v1183
    %1616 = vmatpush1.bf16.msra.mxu0 %v1182
    %1617 = vmatprep.subr.bf16.mxu0 %v1190
    %1618 = vmatpush1.bf16.msra.mxu0 %v1189
    %1619 = vmatprep.subr.bf16.mxu0 %v1197
    %1620 = vmatpush1.bf16.msra.mxu0 %v1196
    %1621 = vmatprep.subr.bf16.mxu0 %v1204
    %1622 = vmatpush1.bf16.msra.mxu0 %v1203
    %1623 = vmatprep.subr.bf16.mxu0 %v1211
    %1624 = vmatpush1.bf16.msra.mxu0 %v1210
    %1625 = vmatprep.subr.bf16.mxu0 %v1218
    %1626 = vmatpush1.bf16.msra.mxu0 %v1217
    %1627 = vmatprep.subr.bf16.mxu0 %v1225
    %1628 = vmatpush1.bf16.msra.mxu0 %v1224
    %1629 = vmatprep.subr.bf16.mxu0 %v1232
    %1630 = vmatpush1.bf16.msra.mxu0 %v1231
    %1631 = vmatprep.subr.bf16.mxu0 %v1239
    %1632 = vmatpush1.bf16.msra.mxu0 %v1238
    %1633 = vmatprep.subr.bf16.mxu0 %v1246
    %1634 = vmatpush1.bf16.msra.mxu0 %v1245
    %1635 = vmatprep.subr.bf16.mxu0 %v1253
    %1636 = vmatpush1.bf16.msra.mxu0 %v1252
    %1637 = vmatprep.subr.bf16.mxu0 %v1260
    %1638 = vmatpush1.bf16.msra.mxu0 %v1259
    %1639 = vmatprep.subr.bf16.mxu0 %v1267
    %1640 = vmatpush1.bf16.msra.mxu0 %v1266
    %1641 = vmatprep.mubr.bf16.mxu0 %v161
    %1642 = vmatmul.mubr.bf16.gmra.mrb[0].mxu0 %v160
    %v1643 = vpop.f32.mrb[0].mxu0
    %v1644 = vadd.f32 %v425, %v1643
    %v1645 = vpop.f32.mrb[0].mxu0
    %v1646 = vadd.f32 %v429, %v1645
    %v1647 = vpop.f32.mrb[0].mxu0
    %v1648 = vpop.f32.mrb[0].mxu0
    %1649 = vdwg.mxu0
    %1650 = vmatprep.subr.bf16.mxu0 %v1274
    %1651 = vmatpush1.bf16.msra.mxu0 %v1273
    %1652 = vmatprep.subr.bf16.mxu0 %v1281
    %1653 = vmatpush1.bf16.msra.mxu0 %v1280
    %1654 = vmatprep.subr.bf16.mxu0 %v1288
    %1655 = vmatpush1.bf16.msra.mxu0 %v1287
    %1656 = vmatprep.subr.bf16.mxu0 %v1295
    %1657 = vmatpush1.bf16.msra.mxu0 %v1294
    %1658 = vmatprep.subr.bf16.mxu0 %v1302
    %1659 = vmatpush1.bf16.msra.mxu0 %v1301
    %1660 = vmatprep.subr.bf16.mxu0 %v1309
    %1661 = vmatpush1.bf16.msra.mxu0 %v1308
    %1662 = vmatprep.subr.bf16.mxu0 %v1316
    %1663 = vmatpush1.bf16.msra.mxu0 %v1315
    %1664 = vmatprep.subr.bf16.mxu0 %v1323
    %1665 = vmatpush1.bf16.msra.mxu0 %v1322
    %1666 = vmatprep.subr.bf16.mxu0 %v1330
    %1667 = vmatpush1.bf16.msra.mxu0 %v1329
    %1668 = vmatprep.subr.bf16.mxu0 %v1337
    %1669 = vmatpush1.bf16.msra.mxu0 %v1336
    %1670 = vmatprep.subr.bf16.mxu0 %v1344
    %1671 = vmatpush1.bf16.msra.mxu0 %v1343
    %1672 = vmatprep.subr.bf16.mxu0 %v1351
    %1673 = vmatpush1.bf16.msra.mxu0 %v1350
    %1674 = vmatprep.subr.bf16.mxu0 %v1358
    %1675 = vmatpush1.bf16.msra.mxu0 %v1357
    %1676 = vmatprep.subr.bf16.mxu0 %v1365
    %1677 = vmatpush1.bf16.msra.mxu0 %v1364
    %1678 = vmatprep.subr.bf16.mxu0 %v1372
    %1679 = vmatpush1.bf16.msra.mxu0 %v1371
    %1680 = vmatprep.subr.bf16.mxu0 %v1379
    %1681 = vmatpush1.bf16.msra.mxu0 %v1378
    %1682 = vmatprep.mubr.bf16.mxu0 %v163
    %1683 = vmatmul.mubr.bf16.gmra.mrb[0].mxu0 %v162
    %v1684 = vpop.f32.mrb[0].mxu0
    %v1685 = vadd.f32 %v1644, %v1684
    %v1686 = vpop.f32.mrb[0].mxu0
    %v1687 = vadd.f32 %v1646, %v1686
    %v1688 = vpop.f32.mrb[0].mxu0
    %v1689 = vpop.f32.mrb[0].mxu0
    %1690 = vdwg.mxu0
    %1691 = vmatprep.subr.bf16.mxu0 %v1164
    %1692 = vmatpush1.bf16.msra.mxu0 %v1163
    %1693 = vmatprep.subr.bf16.mxu0 %v1171
    %1694 = vmatpush1.bf16.msra.mxu0 %v1170
    %1695 = vmatprep.subr.bf16.mxu0 %v1178
    %1696 = vmatpush1.bf16.msra.mxu0 %v1177
    %1697 = vmatprep.subr.bf16.mxu0 %v1185
    %1698 = vmatpush1.bf16.msra.mxu0 %v1184
    %1699 = vmatprep.subr.bf16.mxu0 %v1192
    %1700 = vmatpush1.bf16.msra.mxu0 %v1191
    %1701 = vmatprep.subr.bf16.mxu0 %v1199
    %1702 = vmatpush1.bf16.msra.mxu0 %v1198
    %1703 = vmatprep.subr.bf16.mxu0 %v1206
    %1704 = vmatpush1.bf16.msra.mxu0 %v1205
    %1705 = vmatprep.subr.bf16.mxu0 %v1213
    %1706 = vmatpush1.bf16.msra.mxu0 %v1212
    %1707 = vmatprep.subr.bf16.mxu0 %v1220
    %1708 = vmatpush1.bf16.msra.mxu0 %v1219
    %1709 = vmatprep.subr.bf16.mxu0 %v1227
    %1710 = vmatpush1.bf16.msra.mxu0 %v1226
    %1711 = vmatprep.subr.bf16.mxu0 %v1234
    %1712 = vmatpush1.bf16.msra.mxu0 %v1233
    %1713 = vmatprep.subr.bf16.mxu0 %v1241
    %1714 = vmatpush1.bf16.msra.mxu0 %v1240
    %1715 = vmatprep.subr.bf16.mxu0 %v1248
    %1716 = vmatpush1.bf16.msra.mxu0 %v1247
    %1717 = vmatprep.subr.bf16.mxu0 %v1255
    %1718 = vmatpush1.bf16.msra.mxu0 %v1254
    %1719 = vmatprep.subr.bf16.mxu0 %v1262
    %1720 = vmatpush1.bf16.msra.mxu0 %v1261
    %1721 = vmatprep.subr.bf16.mxu0 %v1269
    %1722 = vmatpush1.bf16.msra.mxu0 %v1268
    %1723 = vmatprep.mubr.bf16.mxu0 %v161
    %1724 = vmatmul.mubr.bf16.gmra.mrb[0].mxu0 %v160
    %v1725 = vpop.f32.mrb[0].mxu0
    %v1726 = vadd.f32 %v433, %v1725
    %v1727 = vpop.f32.mrb[0].mxu0
    %v1728 = vadd.f32 %v437, %v1727
    %v1729 = vpop.f32.mrb[0].mxu0
    %v1730 = vpop.f32.mrb[0].mxu0
    %1731 = vdwg.mxu0
    %1732 = vmatprep.subr.bf16.mxu0 %v1276
    %1733 = vmatpush1.bf16.msra.mxu0 %v1275
    %1734 = vmatprep.subr.bf16.mxu0 %v1283
    %1735 = vmatpush1.bf16.msra.mxu0 %v1282
    %1736 = vmatprep.subr.bf16.mxu0 %v1290
    %1737 = vmatpush1.bf16.msra.mxu0 %v1289
    %1738 = vmatprep.subr.bf16.mxu0 %v1297
    %1739 = vmatpush1.bf16.msra.mxu0 %v1296
    %1740 = vmatprep.subr.bf16.mxu0 %v1304
    %1741 = vmatpush1.bf16.msra.mxu0 %v1303
    %1742 = vmatprep.subr.bf16.mxu0 %v1311
    %1743 = vmatpush1.bf16.msra.mxu0 %v1310
    %1744 = vmatprep.subr.bf16.mxu0 %v1318
    %1745 = vmatpush1.bf16.msra.mxu0 %v1317
    %1746 = vmatprep.subr.bf16.mxu0 %v1325
    %1747 = vmatpush1.bf16.msra.mxu0 %v1324
    %1748 = vmatprep.subr.bf16.mxu0 %v1332
    %1749 = vmatpush1.bf16.msra.mxu0 %v1331
    %1750 = vmatprep.subr.bf16.mxu0 %v1339
    %1751 = vmatpush1.bf16.msra.mxu0 %v1338
    %1752 = vmatprep.subr.bf16.mxu0 %v1346
    %1753 = vmatpush1.bf16.msra.mxu0 %v1345
    %1754 = vmatprep.subr.bf16.mxu0 %v1353
    %1755 = vmatpush1.bf16.msra.mxu0 %v1352
    %1756 = vmatprep.subr.bf16.mxu0 %v1360
    %1757 = vmatpush1.bf16.msra.mxu0 %v1359
    %1758 = vmatprep.subr.bf16.mxu0 %v1367
    %1759 = vmatpush1.bf16.msra.mxu0 %v1366
    %1760 = vmatprep.subr.bf16.mxu0 %v1374
    %1761 = vmatpush1.bf16.msra.mxu0 %v1373
    %1762 = vmatprep.subr.bf16.mxu0 %v1381
    %1763 = vmatpush1.bf16.msra.mxu0 %v1380
    %1764 = vmatprep.mubr.bf16.mxu0 %v163
    %1765 = vmatmul.mubr.bf16.gmra.mrb[0].mxu0 %v162
    %v1766 = vpop.f32.mrb[0].mxu0
    %v1767 = vadd.f32 %v1726, %v1766
    %v1768 = vpop.f32.mrb[0].mxu0
    %v1769 = vadd.f32 %v1728, %v1768
    %v1770 = vpop.f32.mrb[0].mxu0
    %v1771 = vpop.f32.mrb[0].mxu0
    %1772 = vdwg.mxu0
    %1773 = vmatprep.subr.bf16.mxu0 %v1166
    %1774 = vmatpush1.bf16.msra.mxu0 %v1165
    %1775 = vmatprep.subr.bf16.mxu0 %v1173
    %1776 = vmatpush1.bf16.msra.mxu0 %v1172
    %1777 = vmatprep.subr.bf16.mxu0 %v1180
    %1778 = vmatpush1.bf16.msra.mxu0 %v1179
    %1779 = vmatprep.subr.bf16.mxu0 %v1187
    %1780 = vmatpush1.bf16.msra.mxu0 %v1186
    %1781 = vmatprep.subr.bf16.mxu0 %v1194
    %1782 = vmatpush1.bf16.msra.mxu0 %v1193
    %1783 = vmatprep.subr.bf16.mxu0 %v1201
    %1784 = vmatpush1.bf16.msra.mxu0 %v1200
    %1785 = vmatprep.subr.bf16.mxu0 %v1208
    %1786 = vmatpush1.bf16.msra.mxu0 %v1207
    %1787 = vmatprep.subr.bf16.mxu0 %v1215
    %1788 = vmatpush1.bf16.msra.mxu0 %v1214
    %1789 = vmatprep.subr.bf16.mxu0 %v1222
    %1790 = vmatpush1.bf16.msra.mxu0 %v1221
    %1791 = vmatprep.subr.bf16.mxu0 %v1229
    %1792 = vmatpush1.bf16.msra.mxu0 %v1228
    %1793 = vmatprep.subr.bf16.mxu0 %v1236
    %1794 = vmatpush1.bf16.msra.mxu0 %v1235
    %1795 = vmatprep.subr.bf16.mxu0 %v1243
    %1796 = vmatpush1.bf16.msra.mxu0 %v1242
    %1797 = vmatprep.subr.bf16.mxu0 %v1250
    %1798 = vmatpush1.bf16.msra.mxu0 %v1249
    %1799 = vmatprep.subr.bf16.mxu0 %v1257
    %1800 = vmatpush1.bf16.msra.mxu0 %v1256
    %1801 = vmatprep.subr.bf16.mxu0 %v1264
    %1802 = vmatpush1.bf16.msra.mxu0 %v1263
    %1803 = vmatprep.subr.bf16.mxu0 %v1271
    %1804 = vmatpush1.bf16.msra.mxu0 %v1270
    %1805 = vmatprep.mubr.bf16.mxu0 %v161
    %1806 = vmatmul.mubr.bf16.gmra.mrb[0].mxu0 %v160
    %v1807 = vpop.f32.mrb[0].mxu0
    %v1808 = vadd.f32 %v441, %v1807
    %v1809 = vpop.f32.mrb[0].mxu0
    %v1810 = vadd.f32 %v445, %v1809
    %v1811 = vpop.f32.mrb[0].mxu0
    %v1812 = vpop.f32.mrb[0].mxu0
    %1813 = vdwg.mxu0
    %1814 = vmatprep.subr.bf16.mxu0 %v1278
    %1815 = vmatpush1.bf16.msra.mxu0 %v1277
    %1816 = vmatprep.subr.bf16.mxu0 %v1285
    %1817 = vmatpush1.bf16.msra.mxu0 %v1284
    %1818 = vmatprep.subr.bf16.mxu0 %v1292
    %1819 = vmatpush1.bf16.msra.mxu0 %v1291
    %1820 = vmatprep.subr.bf16.mxu0 %v1299
    %1821 = vmatpush1.bf16.msra.mxu0 %v1298
    %1822 = vmatprep.subr.bf16.mxu0 %v1306
    %1823 = vmatpush1.bf16.msra.mxu0 %v1305
    %1824 = vmatprep.subr.bf16.mxu0 %v1313
    %1825 = vmatpush1.bf16.msra.mxu0 %v1312
    %1826 = vmatprep.subr.bf16.mxu0 %v1320
    %1827 = vmatpush1.bf16.msra.mxu0 %v1319
    %1828 = vmatprep.subr.bf16.mxu0 %v1327
    %1829 = vmatpush1.bf16.msra.mxu0 %v1326
    %1830 = vmatprep.subr.bf16.mxu0 %v1334
    %1831 = vmatpush1.bf16.msra.mxu0 %v1333
    %1832 = vmatprep.subr.bf16.mxu0 %v1341
    %1833 = vmatpush1.bf16.msra.mxu0 %v1340
    %1834 = vmatprep.subr.bf16.mxu0 %v1348
    %1835 = vmatpush1.bf16.msra.mxu0 %v1347
    %1836 = vmatprep.subr.bf16.mxu0 %v1355
    %1837 = vmatpush1.bf16.msra.mxu0 %v1354
    %1838 = vmatprep.subr.bf16.mxu0 %v1362
    %1839 = vmatpush1.bf16.msra.mxu0 %v1361
    %1840 = vmatprep.subr.bf16.mxu0 %v1369
    %1841 = vmatpush1.bf16.msra.mxu0 %v1368
    %1842 = vmatprep.subr.bf16.mxu0 %v1376
    %1843 = vmatpush1.bf16.msra.mxu0 %v1375
    %1844 = vmatprep.subr.bf16.mxu0 %v1383
    %1845 = vmatpush1.bf16.msra.mxu0 %v1382
    %1846 = vmatprep.mubr.bf16.mxu0 %v163
    %1847 = vmatmul.mubr.bf16.gmra.mrb[0].mxu0 %v162
    %v1848 = vpop.f32.mrb[0].mxu0
    %v1849 = vadd.f32 %v1808, %v1848
    %v1850 = vpop.f32.mrb[0].mxu0
    %v1851 = vadd.f32 %v1810, %v1850
    %v1852 = vpop.f32.mrb[0].mxu0
    %v1853 = vpop.f32.mrb[0].mxu0
    %1854 = vdwg.mxu0
    %1855 = vmatprep.subr.bf16.mxu0 0
    %1856 = vmatpush1.bf16.msra.mxu0 %v1167
    %1857 = vmatprep.subr.bf16.mxu0 0
    %1858 = vmatpush1.bf16.msra.mxu0 %v1174
    %1859 = vmatprep.subr.bf16.mxu0 0
    %1860 = vmatpush1.bf16.msra.mxu0 %v1181
    %1861 = vmatprep.subr.bf16.mxu0 0
    %1862 = vmatpush1.bf16.msra.mxu0 %v1188
    %1863 = vmatprep.subr.bf16.mxu0 0
    %1864 = vmatpush1.bf16.msra.mxu0 %v1195
    %1865 = vmatprep.subr.bf16.mxu0 0
    %1866 = vmatpush1.bf16.msra.mxu0 %v1202
    %1867 = vmatprep.subr.bf16.mxu0 0
    %1868 = vmatpush1.bf16.msra.mxu0 %v1209
    %1869 = vmatprep.subr.bf16.mxu0 0
    %1870 = vmatpush1.bf16.msra.mxu0 %v1216
    %1871 = vmatprep.subr.bf16.mxu0 0
    %1872 = vmatpush1.bf16.msra.mxu0 %v1223
    %1873 = vmatprep.subr.bf16.mxu0 0
    %1874 = vmatpush1.bf16.msra.mxu0 %v1230
    %1875 = vmatprep.subr.bf16.mxu0 0
    %1876 = vmatpush1.bf16.msra.mxu0 %v1237
    %1877 = vmatprep.subr.bf16.mxu0 0
    %1878 = vmatpush1.bf16.msra.mxu0 %v1244
    %1879 = vmatprep.subr.bf16.mxu0 0
    %1880 = vmatpush1.bf16.msra.mxu0 %v1251
    %1881 = vmatprep.subr.bf16.mxu0 0
    %1882 = vmatpush1.bf16.msra.mxu0 %v1258
    %1883 = vmatprep.subr.bf16.mxu0 0
    %1884 = vmatpush1.bf16.msra.mxu0 %v1265
    %1885 = vmatprep.subr.bf16.mxu0 0
    %1886 = vmatpush1.bf16.msra.mxu0 %v1272
    %1887 = vmatprep.mubr.bf16.mxu0 %v161
    %1888 = vmatmul.mubr.bf16.gmra.mrb[0].mxu0 %v160
    %v1889 = vpop.f32.mrb[0].mxu0
    %v1890 = vadd.f32 %v449, %v1889
    %v1891 = vpop.f32.mrb[0].mxu0
    %v1892 = vpop.f32.mrb[0].mxu0
    %v1893 = vpop.f32.mrb[0].mxu0
    %1894 = vdwg.mxu0
    %1895 = vmatprep.subr.bf16.mxu0 0
    %1896 = vmatpush1.bf16.msra.mxu0 %v1279
    %1897 = vmatprep.subr.bf16.mxu0 0
    %1898 = vmatpush1.bf16.msra.mxu0 %v1286
    %1899 = vmatprep.subr.bf16.mxu0 0
    %1900 = vmatpush1.bf16.msra.mxu0 %v1293
    %1901 = vmatprep.subr.bf16.mxu0 0
    %1902 = vmatpush1.bf16.msra.mxu0 %v1300
    %1903 = vmatprep.subr.bf16.mxu0 0
    %1904 = vmatpush1.bf16.msra.mxu0 %v1307
    %1905 = vmatprep.subr.bf16.mxu0 0
    %1906 = vmatpush1.bf16.msra.mxu0 %v1314
    %1907 = vmatprep.subr.bf16.mxu0 0
    %1908 = vmatpush1.bf16.msra.mxu0 %v1321
    %1909 = vmatprep.subr.bf16.mxu0 0
    %1910 = vmatpush1.bf16.msra.mxu0 %v1328
    %1911 = vmatprep.subr.bf16.mxu0 0
    %1912 = vmatpush1.bf16.msra.mxu0 %v1335
    %1913 = vmatprep.subr.bf16.mxu0 0
    %1914 = vmatpush1.bf16.msra.mxu0 %v1342
    %1915 = vmatprep.subr.bf16.mxu0 0
    %1916 = vmatpush1.bf16.msra.mxu0 %v1349
    %1917 = vmatprep.subr.bf16.mxu0 0
    %1918 = vmatpush1.bf16.msra.mxu0 %v1356
    %1919 = vmatprep.subr.bf16.mxu0 0
    %1920 = vmatpush1.bf16.msra.mxu0 %v1363
    %1921 = vmatprep.subr.bf16.mxu0 0
    %1922 = vmatpush1.bf16.msra.mxu0 %v1370
    %1923 = vmatprep.subr.bf16.mxu0 0
    %1924 = vmatpush1.bf16.msra.mxu0 %v1377
    %1925 = vmatprep.subr.bf16.mxu0 0
    %1926 = vmatpush1.bf16.msra.mxu0 %v1384
    %1927 = vmatprep.mubr.bf16.mxu0 %v163
    %1928 = vmatmul.mubr.bf16.gmra.mrb[0].mxu0 %v162
    %v1929 = vpop.f32.mrb[0].mxu0
    %v1930 = vadd.f32 %v1890, %v1929
    %v1931 = vpop.f32.mrb[0].mxu0
    %v1932 = vpop.f32.mrb[0].mxu0
    %v1933 = vpop.f32.mrb[0].mxu0
    %1934 = vdwg.mxu0
    %v1935 = vxor.u32 %v1685, 2147483648
    %v1936 = vxor.u32 %v1687, 2147483648
    %v1937 = vxor.u32 %v1767, 2147483648
    %v1938 = vxor.u32 %v1769, 2147483648
    %v1939 = vxor.u32 %v1849, 2147483648
    %v1940 = vxor.u32 %v1851, 2147483648
    %v1941 = vxor.u32 %v1930, 2147483648
    %v1942 = vmul.f32 %v1935, 1.442695
    %v1943 = vpow.pop %v1942
    %v1944 = vmul.f32 %v1936, 1.442695
    %v1945 = vpow.pop %v1944
    %v1946 = vmul.f32 %v1937, 1.442695
    %v1947 = vpow.pop %v1946
    %v1948 = vmul.f32 %v1938, 1.442695
    %v1949 = vpow.pop %v1948
    %v1950 = vmul.f32 %v1939, 1.442695
    %v1951 = vpow.pop %v1950
    %v1952 = vmul.f32 %v1940, 1.442695
    %v1953 = vpow.pop %v1952
    %v1954 = vmul.f32 %v1941, 1.442695
    %v1955 = vpow.pop %v1954
    %v1956 = vadd.f32 %v1943, 1.0
    %v1957 = vadd.f32 %v1945, 1.0
    %v1958 = vadd.f32 %v1947, 1.0
    %v1959 = vadd.f32 %v1949, 1.0
    %v1960 = vadd.f32 %v1951, 1.0
    %v1961 = vadd.f32 %v1953, 1.0
    %v1962 = vadd.f32 %v1955, 1.0
    %v1963 = vrcp.pop %v1956
    %v1964 = vmul.f32 1.0, %v1963
    %v1965 = vrcp.pop %v1957
    %v1966 = vmul.f32 1.0, %v1965
    %v1967 = vrcp.pop %v1958
    %v1968 = vmul.f32 1.0, %v1967
    %v1969 = vrcp.pop %v1959
    %v1970 = vmul.f32 1.0, %v1969
    %v1971 = vrcp.pop %v1960
    %v1972 = vmul.f32 1.0, %v1971
    %v1973 = vrcp.pop %v1961
    %v1974 = vmul.f32 1.0, %v1973
    %v1975 = vrcp.pop %v1962
    %v1976 = vmul.f32 1.0, %v1975
    %v1977 = vpack.c.bf16 %v1964, %v1964
    %v1978 = vpack.c.bf16 %v1966, %v1966
    %v1979 = vpack.c.bf16 %v1968, %v1968
    %v1980 = vpack.c.bf16 %v1970, %v1970
    %v1981 = vpack.c.bf16 %v1972, %v1972
    %v1982 = vpack.c.bf16 %v1974, %v1974
    %v1983 = vpack.c.bf16 %v1976, %v1976
    %v1991 = vunpack.c.l.b16 %v1977
    %v1992 = vunpack.c.l.b16 %v1978
    %v1993 = vunpack.c.l.b16 %v1979
    %v1994 = vunpack.c.l.b16 %v1980
    %v1995 = vunpack.c.l.b16 %v1981
    %v1996 = vunpack.c.l.b16 %v1982
    %v1997 = vunpack.c.l.b16 %v1983
    %v1998 = vpack.c.b16 %v1992, %v1991
    %v1999 = vpack.c.b16 %v1994, %v1993
    %v2000 = vpack.c.b16 %v1996, %v1995
    %v2001 = vpack.c.b16 %v1997, %v1997
    %2006 = vst [vmem:[#allocation2] sm:$0xff] %v1998
    %2007 = vst [vmem:[#allocation2 + $0x8] sm:$0xff] %v1999
    %2008 = vst [vmem:[#allocation2 + $0x10] sm:$0xff] %v2000
    %vm2009 = vcmask 125952
    %2010 = vst.msk [vmem:[#allocation2 + $0x18] sm:$0xf] %vm2009, %v2001
    // Predicated region
    $region22: #{tpu_custom_call.1} parent=1 // pred_check
      _
    $region23: #{tpu_custom_call.1} parent=1 // pred_check_branch
      %2012 = sbr.rel (0) target = $region25
    $region24: #{tpu_custom_call.1} parent=1 // pred_region
      %s2014 = ssub.s32 448, 448
      %2015 = vsyncadd [#allocation3], %s2014
      %s2017 = sshll.u32 [#allocation2], 4
      %s2018 = int_to_ptr.vmem [resolvable:$true] %s2017
      %2020 = dma.vmem_to_hbm [thread:$0]  %s2018, 448, %s5, [#allocation3]
    $region25: #{tpu_custom_call.1} parent=1 // pred_fallthru
      _
    // Predicated region
    $region26: #{tpu_custom_call.1} parent=1 // pred_check
      _
    $region27: #{tpu_custom_call.1} parent=1 // pred_check_branch
      %2022 = sbr.rel (0) target = $region29
    $region28: #{tpu_custom_call.1} parent=1 // pred_region
      %2023 = dma.done [#allocation3], 448
    $region29: #{tpu_custom_call.1} parent=1 // pred_fallthru
      _
    %2024 = vsyncpa [#allocation3], 1

</llo_original>
